<compile_context>
chip_gen: v7x
topology: tpu7x:2x2x1
jax: 0.10.0
libtpu: 0.0.40
codegen_flags: <defaults>
</compile_context>

<pallas_src>
import jax
import jax.numpy as jnp
from jax.experimental import pallas as pl
from jax.experimental.pallas import tpu as pltpu

ALPHA = 1.0            # self.alpha = 1 in the PyTorch module
LANE = 128             # TPU lane width (last-dim tiling granularity)
PAD_DIST2 = 1e30       # large FINITE constant for padded cluster columns (not inf)


def _round_up(v, m):
    return ((v + m - 1) // m) * m


def _vmem_capacity_bytes():
    try:
        return int(pltpu.get_tpu_info().vmem_capacity_bytes)
    except Exception:
        return 64 * 1024 * 1024        # conservative fallback: v7x per-core VMEM


def _plan_batch_tiling(n, f, d_pad, k_pad, tile_n=None):
    """Pick (tile_n, n_pad, vmem_limit_bytes) from this generation's VMEM capacity."""
    cap = _vmem_capacity_bytes()
    vmem_limit = min(int(cap * 3 // 4), 112 * 1024 * 1024)
    budget = cap // 2                              # headroom for compiler scratch
    # resident operands (double-buffered by the default pipeline):
    #   w_enc (bf16), merged rhs (bf16), b_enc / b_dec / c_sq (f32)
    resident = 2 * (2 * f * d_pad + 2 * d_pad * (f + k_pad)
                    + 4 * (d_pad + f + k_pad))
    # per batch row: x (f32) + q/latent/recon (f32) double-buffered, plus f32
    # in-kernel temporaries (merged matmul result, dist2, q).
    per_row = 2 * 4 * (2 * f + k_pad + d_pad) + 12 * (f + k_pad)
    budget_rows = max(8, (budget - resident) // per_row)
    row_cap = 1024 if cap >= (100 << 20) else 512  # bigger tiles on v5e/v6e
    max_rows = int(min(row_cap, budget_rows))

    if tile_n is None:
        if n <= max_rows:
            if n >= 16 and n % 16 == 0:
                tile_n = n // 2        # >=2 grid steps -> both v7x TensorCores busy
            else:
                tile_n = n             # single full-batch block, no padded x copy
        else:
            tile0 = max(8, (max_rows // 8) * 8)
            tile_n = tile0
            t = tile0
            while t >= max(8, tile0 // 4):   # prefer a tile that divides n (no pad)
                if n % t == 0:
                    tile_n = t
                    break
                t -= 8
    n_pad = _round_up(n, tile_n)
    return int(tile_n), int(n_pad), int(vmem_limit)


# ---------------------------------------------------------------------------
# Fused kernel: encoder -> [decoder | cluster cross-term] -> Student's-t softmax.
#   x_ref:      (TILE_N, F)          f32 (cast to bf16 in-kernel for the MXU)
#   w_enc_ref:  (F, D_pad)   bf16    b_enc_ref: (1, D_pad)  f32
#   rhs_ref:    (D_pad, F + K_pad)   bf16   == [ w_dec | -2 * clusters^T ]
#   b_dec_ref:  (1, F)       f32     c_sq_ref: (1, K_pad)   f32 (padded lanes = 1e30)
#   outputs:    q (TILE_N, K_pad), latent (TILE_N, D_pad), recon (TILE_N, F)
# ---------------------------------------------------------------------------
def _dec_fused_kernel(x_ref, w_enc_ref, b_enc_ref, rhs_ref, b_dec_ref, c_sq_ref,
                      q_ref, latent_ref, recon_ref):
    f = recon_ref.shape[1]

    # --- encoder (MXU, bf16 feeds, f32 accumulation) ---
    latent = (jnp.dot(x_ref[...].astype(jnp.bfloat16), w_enc_ref[...],
                      preferred_element_type=jnp.float32) + b_enc_ref[...])
    latent_ref[...] = latent.astype(latent_ref.dtype)

    # --- ONE merged MXU call: [recon_pre | -2 z.c] = latent @ [w_dec | -2 c^T] ---
    out2 = jnp.dot(latent.astype(jnp.bfloat16), rhs_ref[...],
                   preferred_element_type=jnp.float32)
    recon_ref[...] = (out2[:, :f] + b_dec_ref[...]).astype(recon_ref.dtype)

    # --- Student's t soft assignment (alpha == 1 -> the pow() is a no-op) ---
    # dist2[i,j] = ||z_i||^2 + ||c_j||^2 - 2 z_i.c_j ; padded cluster columns carry
    # ||c||^2 = 1e30 so their q is ~0 and no explicit column mask is needed.
    z_sq = jnp.sum(latent * latent, axis=1, keepdims=True)
    dist2 = jnp.maximum(z_sq + c_sq_ref[...] + out2[:, f:], 0.0)
    q = 1.0 / (1.0 + (dist2 if ALPHA == 1.0 else dist2 / ALPHA))
    if ALPHA != 1.0:
        q = q ** ((ALPHA + 1.0) / 2.0)
    # exact normalization so rows sum to 1 (approx reciprocal was not tight enough)
    q_ref[...] = (q / jnp.sum(q, axis=1, keepdims=True)).astype(q_ref.dtype)


# ---------------------------------------------------------------------------
# DEC forward: (q, latent_space, reconstructed)
# ---------------------------------------------------------------------------
def dec_forward(x, w_enc, b_enc, w_dec, b_dec, clusters, *, tile_n=None):
    n = x.shape[0]
    x_flat = x.reshape(n, -1).astype(jnp.float32)          # NCHW -> (N, C*H*W)
    f = x_flat.shape[1]
    d = w_enc.shape[1]
    k = clusters.shape[0]
    d_pad = _round_up(d, LANE)
    k_pad = _round_up(k, LANE)

    tile_n, n_pad, vmem_limit = _plan_batch_tiling(n, f, d_pad, k_pad, tile_n)

    x_p = x_flat
    if n_pad != n:                                          # pad only when unavoidable
        x_p = jnp.zeros((n_pad, f), x_flat.dtype).at[:n].set(x_flat)

    f32, bf16 = jnp.float32, jnp.bfloat16
    c_f32 = clusters.astype(f32)
    w_enc_p = jnp.zeros((f, d_pad), bf16).at[:, :d].set(w_enc.astype(bf16))
    b_enc_p = jnp.zeros((1, d_pad), f32).at[:, :d].set(b_enc.astype(f32).reshape(1, d))
    # merged resident RHS: [ w_dec | -2 * clusters^T ], zero-padded latent rows
    rhs = jnp.zeros((d_pad, f + k_pad), bf16)
    rhs = rhs.at[:d, :f].set(w_dec.astype(bf16))
    rhs = rhs.at[:d, f:f + k].set((-2.0 * c_f32).T.astype(bf16))
    b_dec_p = b_dec.astype(f32).reshape(1, f)
    c_sq = jnp.full((1, k_pad), PAD_DIST2, f32).at[0, :k].set(
        jnp.sum(c_f32 * c_f32, axis=1))

    grid = (n_pad // tile_n,)
    flops = 2 * n_pad * d_pad * (2 * f + k_pad)
    bytes_accessed = (4 * n_pad * (2 * f + k_pad + d_pad)
                      + 2 * (f * d_pad + d_pad * (f + k_pad))
                      + 4 * (d_pad + f + k_pad))

    q_p, latent_p, recon_p = pl.pallas_call(
        _dec_fused_kernel,
        out_shape=(
            jax.ShapeDtypeStruct((n_pad, k_pad), f32),
            jax.ShapeDtypeStruct((n_pad, d_pad), f32),
            jax.ShapeDtypeStruct((n_pad, f), f32),
        ),
        grid=grid,
        in_specs=[
            pl.BlockSpec((tile_n, f), lambda i: (i, 0)),            # x (pipelined)
            pl.BlockSpec((f, d_pad), lambda i: (0, 0)),             # w_enc (resident)
            pl.BlockSpec((1, d_pad), lambda i: (0, 0)),             # b_enc (resident)
            pl.BlockSpec((d_pad, f + k_pad), lambda i: (0, 0)),     # [w_dec | -2 c^T]
            pl.BlockSpec((1, f), lambda i: (0, 0)),                 # b_dec (resident)
            pl.BlockSpec((1, k_pad), lambda i: (0, 0)),             # ||c||^2 (+1e30 pad)
        ],
        out_specs=(
            pl.BlockSpec((tile_n, k_pad), lambda i: (i, 0)),        # q (lane-dense)
            pl.BlockSpec((tile_n, d_pad), lambda i: (i, 0)),        # latent (lane-dense)
            pl.BlockSpec((tile_n, f), lambda i: (i, 0)),            # reconstructed
        ),
        compiler_params=pltpu.CompilerParams(
            dimension_semantics=("parallel",),
            vmem_limit_bytes=vmem_limit,
        ),
        cost_estimate=pl.CostEstimate(
            flops=flops,
            transcendentals=2 * n_pad * k_pad,
            bytes_accessed=bytes_accessed,
        ),
    )(x_p, w_enc_p, b_enc_p, rhs, b_dec_p, c_sq)

    return q_p[:n, :k], latent_p[:n, :d], recon_p[:n]


# ---------------------------------------------------------------------------
# Deterministic parameter init (xavier_uniform, matching nn.init semantics)
# ---------------------------------------------------------------------------
def xavier_uniform(key, shape):
    fan_in, fan_out = shape[1], shape[0]
    bound = (6.0 / (fan_in + fan_out)) ** 0.5
    return jax.random.uniform(key, shape, jnp.float32, -bound, bound)


if __name__ == "__main__":
    key = jax.random.PRNGKey(0)
    N, C, H, W = 2, 4, 16, 16          # small NCHW input
    F = C * H * W                      # 1024 flattened features
    LATENT_DIMS = 32
    N_CLUSTERS = 8

    k_x, k_enc, k_dec, k_clu = jax.random.split(key, 4)
    x = jax.random.normal(k_x, (N, C, H, W), dtype=jnp.float32)

    # synthetic linear autoencoder params
    w_enc = xavier_uniform(k_enc, (F, LATENT_DIMS))
    b_enc = jnp.zeros((1, LATENT_DIMS), jnp.float32)
    w_dec = xavier_uniform(k_dec, (LATENT_DIMS, F))
    b_dec = jnp.zeros((1, F), jnp.float32)

    # clustering_layer: nn.Parameter(n_clusters, latent_dims), xavier_uniform_
    clustering_layer = xavier_uniform(k_clu, (N_CLUSTERS, LATENT_DIMS))

    q, latent, recon = dec_forward(x, w_enc, b_enc, w_dec, b_dec, clustering_layer)
    jax.block_until_ready((q, latent, recon))

    # --- pure-JAX reference (same math as the PyTorch module, f32) ---
    x_flat = x.reshape(N, -1)
    latent_ref = x_flat @ w_enc + b_enc
    recon_ref = latent_ref @ w_dec + b_dec
    diff = latent_ref[:, None, :] - clustering_layer[None, :, :]
    q_ref = 1.0 / (1.0 + jnp.sum(diff * diff, axis=2) / ALPHA)
    q_ref = q_ref / jnp.sum(q_ref, axis=1, keepdims=True)

    assert q.shape == (N, N_CLUSTERS)
    assert latent.shape == (N, LATENT_DIMS)
    assert recon.shape == (N, F)
    # bf16 MXU feeds -> slightly loose tolerances on the matmul outputs
    assert bool(jnp.allclose(latent, latent_ref, atol=3e-2, rtol=3e-2))
    assert bool(jnp.allclose(recon, recon_ref, atol=3e-2, rtol=3e-2))
    assert bool(jnp.allclose(q, q_ref, atol=5e-3, rtol=5e-3))
    # exact normalization: q rows are valid probability distributions
    assert bool(jnp.allclose(jnp.sum(q, axis=1), 1.0, atol=1e-3))

    print("KERNEL_OK")
</pallas_src>

<mosaic_0001>
module attributes {stable_mosaic.version = 11 : i64} {
  func.func @_dec_fused_kernel(%arg0: i32, %arg1: memref<2x1024xf32, #tpu.memory_space<vmem>>, %arg2: memref<1024x128xbf16, #tpu.memory_space<vmem>>, %arg3: memref<1x128xf32, #tpu.memory_space<vmem>>, %arg4: memref<128x1152xbf16, #tpu.memory_space<vmem>>, %arg5: memref<1x1024xf32, #tpu.memory_space<vmem>>, %arg6: memref<1x128xf32, #tpu.memory_space<vmem>>, %arg7: memref<2x128xf32, #tpu.memory_space<vmem>>, %arg8: memref<2x128xf32, #tpu.memory_space<vmem>>, %arg9: memref<2x1024xf32, #tpu.memory_space<vmem>>) attributes {dimension_semantics = [#tpu.dimension_semantics<parallel>], iteration_bounds = array<i64: 1>, scalar_prefetch = 0 : i64, scratch_operands = 0 : i64, tpu.core_type = #tpu.core_type<tc>, window_params = [{transform_indices = @transform_0, window_bounds = array<i64: 2, 1024>}, {pipeline_mode = #tpu.pipeline_mode<synchronous>, transform_indices = @transform_1, window_bounds = array<i64: 1024, 128>}, {pipeline_mode = #tpu.pipeline_mode<synchronous>, transform_indices = @transform_2, window_bounds = array<i64: 1, 128>}, {pipeline_mode = #tpu.pipeline_mode<synchronous>, transform_indices = @transform_3, window_bounds = array<i64: 128, 1152>}, {pipeline_mode = #tpu.pipeline_mode<synchronous>, transform_indices = @transform_4, window_bounds = array<i64: 1, 1024>}, {pipeline_mode = #tpu.pipeline_mode<synchronous>, transform_indices = @transform_5, window_bounds = array<i64: 1, 128>}, {transform_indices = @transform_6, window_bounds = array<i64: 2, 128>}, {transform_indices = @transform_7, window_bounds = array<i64: 2, 128>}, {transform_indices = @transform_8, window_bounds = array<i64: 2, 1024>}]} {
    %c0 = arith.constant 0 : index
    %c0_0 = arith.constant 0 : index
    %0 = vector.load %arg1[%c0, %c0_0] : memref<2x1024xf32, #tpu.memory_space<vmem>>, vector<2x1024xf32>
    %1 = arith.truncf %0 : vector<2x1024xf32> to vector<2x1024xbf16>
    %c0_1 = arith.constant 0 : index
    %c0_2 = arith.constant 0 : index
    %2 = vector.load %arg2[%c0_1, %c0_2] : memref<1024x128xbf16, #tpu.memory_space<vmem>>, vector<1024x128xbf16>
    %cst = arith.constant dense<0.000000e+00> : vector<2x128xf32>
    %3 = tpu.matmul %1, %2, %cst {dimension_numbers = #tpu.dot_dimension_numbers<[1], [0], [0], [1], [0, 0, 1, 1], [], []>} : vector<2x1024xbf16>, vector<1024x128xbf16>, vector<2x128xf32> -> vector<2x128xf32>
    %c0_3 = arith.constant 0 : index
    %c0_4 = arith.constant 0 : index
    %4 = vector.load %arg3[%c0_3, %c0_4] : memref<1x128xf32, #tpu.memory_space<vmem>>, vector<1x128xf32>
    %5 = vector.broadcast %4 : vector<1x128xf32> to vector<2x128xf32>
    %6 = arith.addf %3, %5 : vector<2x128xf32>
    %c0_5 = arith.constant 0 : index
    %c0_6 = arith.constant 0 : index
    %7 = vector.load %arg8[%c0_5, %c0_6] : memref<2x128xf32, #tpu.memory_space<vmem>>, vector<2x128xf32>
    tpu.vector_store %arg8[%c0_5, %c0_6], %6 {strides = array<i32>} : memref<2x128xf32, #tpu.memory_space<vmem>>, vector<2x128xf32>,
    %8 = arith.truncf %6 : vector<2x128xf32> to vector<2x128xbf16>
    %c0_7 = arith.constant 0 : index
    %c0_8 = arith.constant 0 : index
    %9 = vector.load %arg4[%c0_7, %c0_8] : memref<128x1152xbf16, #tpu.memory_space<vmem>>, vector<128x1152xbf16>
    %cst_9 = arith.constant dense<0.000000e+00> : vector<2x1152xf32>
    %10 = tpu.matmul %8, %9, %cst_9 {dimension_numbers = #tpu.dot_dimension_numbers<[1], [0], [0], [1], [0, 0, 1, 1], [], []>} : vector<2x128xbf16>, vector<128x1152xbf16>, vector<2x1152xf32> -> vector<2x1152xf32>
    %11 = vector.extract_strided_slice %10 {offsets = [0, 0], sizes = [2, 1024], strides = [1, 1]} : vector<2x1152xf32> to vector<2x1024xf32>
    %c0_10 = arith.constant 0 : index
    %c0_11 = arith.constant 0 : index
    %12 = vector.load %arg5[%c0_10, %c0_11] : memref<1x1024xf32, #tpu.memory_space<vmem>>, vector<1x1024xf32>
    %13 = vector.broadcast %12 : vector<1x1024xf32> to vector<2x1024xf32>
    %14 = arith.addf %11, %13 : vector<2x1024xf32>
    %c0_12 = arith.constant 0 : index
    %c0_13 = arith.constant 0 : index
    %15 = vector.load %arg9[%c0_12, %c0_13] : memref<2x1024xf32, #tpu.memory_space<vmem>>, vector<2x1024xf32>
    tpu.vector_store %arg9[%c0_12, %c0_13], %14 {strides = array<i32>} : memref<2x1024xf32, #tpu.memory_space<vmem>>, vector<2x1024xf32>,
    %16 = arith.mulf %6, %6 : vector<2x128xf32>
    %cst_14 = arith.constant dense<0.000000e+00> : vector<2xf32>
    %17 = vector.multi_reduction <add>, %16, %cst_14 [1] : vector<2x128xf32> to vector<2xf32>
    %18 = vector.shape_cast %17 : vector<2xf32> to vector<2x1xf32>
    %c0_15 = arith.constant 0 : index
    %c0_16 = arith.constant 0 : index
    %19 = vector.load %arg6[%c0_15, %c0_16] : memref<1x128xf32, #tpu.memory_space<vmem>>, vector<1x128xf32>
    %20 = vector.broadcast %18 : vector<2x1xf32> to vector<2x128xf32>
    %21 = vector.broadcast %19 : vector<1x128xf32> to vector<2x128xf32>
    %22 = arith.addf %20, %21 : vector<2x128xf32>
    %23 = vector.extract_strided_slice %10 {offsets = [0, 1024], sizes = [2, 128], strides = [1, 1]} : vector<2x1152xf32> to vector<2x128xf32>
    %24 = arith.addf %22, %23 : vector<2x128xf32>
    %cst_17 = arith.constant 0.000000e+00 : f32
    %25 = vector.broadcast %cst_17 : f32 to vector<2x128xf32>
    %26 = arith.maximumf %24, %25 : vector<2x128xf32>
    %cst_18 = arith.constant 1.000000e+00 : f32
    %27 = vector.broadcast %cst_18 : f32 to vector<2x128xf32>
    %28 = arith.addf %27, %26 : vector<2x128xf32>
    %cst_19 = arith.constant 1.000000e+00 : f32
    %29 = vector.broadcast %cst_19 : f32 to vector<2x128xf32>
    %30 = arith.divf %29, %28 : vector<2x128xf32>
    %cst_20 = arith.constant dense<0.000000e+00> : vector<2xf32>
    %31 = vector.multi_reduction <add>, %30, %cst_20 [1] : vector<2x128xf32> to vector<2xf32>
    %32 = vector.shape_cast %31 : vector<2xf32> to vector<2x1xf32>
    %33 = vector.broadcast %32 : vector<2x1xf32> to vector<2x128xf32>
    %34 = arith.divf %30, %33 : vector<2x128xf32>
    %c0_21 = arith.constant 0 : index
    %c0_22 = arith.constant 0 : index
    %35 = vector.load %arg7[%c0_21, %c0_22] : memref<2x128xf32, #tpu.memory_space<vmem>>, vector<2x128xf32>
    tpu.vector_store %arg7[%c0_21, %c0_22], %34 {strides = array<i32>} : memref<2x128xf32, #tpu.memory_space<vmem>>, vector<2x128xf32>,
    return
  }
  func.func @transform_0(%arg0: i32) -> (i32, i32) {
    %c0_i32 = arith.constant 0 : i32
    %c0_i32_0 = arith.constant 0 : i32
    return %arg0, %c0_i32 : i32, i32
  }
  func.func @transform_1(%arg0: i32) -> (i32, i32) {
    %c0_i32 = arith.constant 0 : i32
    %c0_i32_0 = arith.constant 0 : i32
    %c0_i32_1 = arith.constant 0 : i32
    return %c0_i32, %c0_i32_0 : i32, i32
  }
  func.func @transform_2(%arg0: i32) -> (i32, i32) {
    %c0_i32 = arith.constant 0 : i32
    %c0_i32_0 = arith.constant 0 : i32
    %c0_i32_1 = arith.constant 0 : i32
    return %c0_i32, %c0_i32_0 : i32, i32
  }
  func.func @transform_3(%arg0: i32) -> (i32, i32) {
    %c0_i32 = arith.constant 0 : i32
    %c0_i32_0 = arith.constant 0 : i32
    %c0_i32_1 = arith.constant 0 : i32
    return %c0_i32, %c0_i32_0 : i32, i32
  }
  func.func @transform_4(%arg0: i32) -> (i32, i32) {
    %c0_i32 = arith.constant 0 : i32
    %c0_i32_0 = arith.constant 0 : i32
    %c0_i32_1 = arith.constant 0 : i32
    return %c0_i32, %c0_i32_0 : i32, i32
  }
  func.func @transform_5(%arg0: i32) -> (i32, i32) {
    %c0_i32 = arith.constant 0 : i32
    %c0_i32_0 = arith.constant 0 : i32
    %c0_i32_1 = arith.constant 0 : i32
    return %c0_i32, %c0_i32_0 : i32, i32
  }
  func.func @transform_6(%arg0: i32) -> (i32, i32) {
    %c0_i32 = arith.constant 0 : i32
    %c0_i32_0 = arith.constant 0 : i32
    return %arg0, %c0_i32 : i32, i32
  }
  func.func @transform_7(%arg0: i32) -> (i32, i32) {
    %c0_i32 = arith.constant 0 : i32
    %c0_i32_0 = arith.constant 0 : i32
    return %arg0, %c0_i32 : i32, i32
  }
  func.func @transform_8(%arg0: i32) -> (i32, i32) {
    %c0_i32 = arith.constant 0 : i32
    %c0_i32_0 = arith.constant 0 : i32
    return %arg0, %c0_i32 : i32, i32
  }
}

</mosaic_0001>

<llo_original>
// kernel: tpu_custom_call.1
$region0: #{tpu_custom_call.1}
  #allocation0 [shape = 'u32[]', space=smem, size = 0x4, offset = 0x4, fixed_abs, tag = 'smem constant byte address 0x4 - core index']
  #allocation1 [shape = 'u32[144,128]{1,0:T(1,128)}', space=vmem, size = 0x12000, scoped, tag = 'internal scratch']
  %s0 = inlined_call_operand.hbm [shape: f32[2,1024], index: 0, kind: input, shape index: {}]
  %s1 = inlined_call_operand.hbm [shape: bf16[1024,128], index: 1, kind: input, shape index: {}]
  %s2 = inlined_call_operand.vmem [shape: f32[1,128], index: 2, kind: input, shape index: {}]
  %s3 = inlined_call_operand.hbm [shape: bf16[128,1152], index: 3, kind: input, shape index: {}]
  %s4 = inlined_call_operand.vmem [shape: f32[1,1024], index: 4, kind: input, shape index: {}]
  %s5 = inlined_call_operand.vmem [shape: f32[1,128], index: 5, kind: input, shape index: {}]
  %s6 = inlined_call_operand.hbm [shape: f32[2,128], index: 6, kind: output, shape index: {0}]
  %s7 = inlined_call_operand.hbm [shape: f32[2,128], index: 7, kind: output, shape index: {1}]
  %s8 = inlined_call_operand.hbm [shape: f32[2,1024], index: 8, kind: output, shape index: {2}]
  %9 = xla_tuple %s6, %s7, %s8
  %s10 = sld [smem:[#allocation0]]
  $region62: #{tpu_custom_call.1} parent=0
    _
  %s12 = ssub.s32 1, %s10
  %s13 = scalar_select 0, %s12, %s10
  $region1: #{tpu_custom_call.1} parent=0
    #allocation2 [shape = 'u8[8192]{0}', space=vmem, size = 0x2000, scoped, tag = 'input window, operand 0, single buffered']
    #allocation3 [shape = 's32[1]{0}', space=sflag, size = 0x4, scoped, tag = 'scoped memory for tpu_custom_call.1']
    #allocation4 [shape = 's32[1]{0}', space=sflag, size = 0x4, scoped, tag = 'scoped memory for tpu_custom_call.1']
    #allocation5 [shape = 'u8[262144]{0}', space=vmem, size = 0x40000, scoped, tag = 'input window, operand 1, single buffered']
    #allocation6 [shape = 's32[1]{0}', space=sflag, size = 0x4, scoped, tag = 'scoped memory for tpu_custom_call.1']
    #allocation7 [shape = 'u8[294912]{0}', space=vmem, size = 0x48000, scoped, tag = 'input window, operand 3, single buffered']
    #allocation8 [shape = 'u8[1024]{0}', space=vmem, size = 0x400, scoped, tag = 'output window, operand 0, single buffered']
    #allocation9 [shape = 'u8[1024]{0}', space=vmem, size = 0x400, scoped, tag = 'output window, operand 1, single buffered']
    #allocation10 [shape = 's32[1]{0}', space=sflag, size = 0x4, scoped, tag = 'scoped memory for tpu_custom_call.1']
    #allocation11 [shape = 'u8[8192]{0}', space=vmem, size = 0x2000, scoped, tag = 'output window, operand 2, single buffered']
    %14 = vsyncpa [#allocation3], 0
    %15 = vsyncpa [#allocation6], 0
    %16 = vsyncpa [#allocation4], 0
    %17 = vsyncpa [#allocation10], 0
    // Predicated region
    $region2: #{tpu_custom_call.1} parent=1 // pred_check
      _
    $region3: #{tpu_custom_call.1} parent=1 // pred_check_branch
      %19 = sbr.rel (0) target = $region5
    $region4: #{tpu_custom_call.1} parent=1 // pred_region
      %s21 = ssub.s32 256, 256
      %22 = vsyncadd [#allocation3], %s21
      %s24 = sshll.u32 [#allocation2], 4
      %s25 = int_to_ptr.vmem [resolvable:$true] %s24
      %27 = dma.hbm_to_vmem [thread:$0]  %s0, 256, %s25, [#allocation3]
    $region5: #{tpu_custom_call.1} parent=1 // pred_fallthru
      _
    // Predicated region
    $region6: #{tpu_custom_call.1} parent=1 // pred_check
      _
    $region7: #{tpu_custom_call.1} parent=1 // pred_check_branch
      %29 = sbr.rel (0) target = $region9
    $region8: #{tpu_custom_call.1} parent=1 // pred_region
      %s31 = ssub.s32 8192, 8192
      %32 = vsyncadd [#allocation6], %s31
      %s33 = sshll.u32 [#allocation5], 4
      %s34 = int_to_ptr.vmem [resolvable:$true] %s33
      %39 = dma.hbm_to_vmem [thread:$0]  %s1, 8192, %s34, [#allocation6], 64, 64, 4
    $region9: #{tpu_custom_call.1} parent=1 // pred_fallthru
      _
    // Predicated region
    $region10: #{tpu_custom_call.1} parent=1 // pred_check
      _
    $region11: #{tpu_custom_call.1} parent=1 // pred_check_branch
      %41 = sbr.rel (0) target = $region13
    $region12: #{tpu_custom_call.1} parent=1 // pred_region
      _
    $region13: #{tpu_custom_call.1} parent=1 // pred_fallthru
      _
    // Predicated region
    $region14: #{tpu_custom_call.1} parent=1 // pred_check
      _
    $region15: #{tpu_custom_call.1} parent=1 // pred_check_branch
      %43 = sbr.rel (0) target = $region17
    $region16: #{tpu_custom_call.1} parent=1 // pred_region
      %s45 = ssub.s32 9216, 9216
      %46 = vsyncadd [#allocation6], %s45
      %s47 = sshll.u32 [#allocation7], 4
      %s48 = int_to_ptr.vmem [resolvable:$true] %s47
      %53 = dma.hbm_to_vmem [thread:$0]  %s3, 9216, %s48, [#allocation6], 576, 576, 36
    $region17: #{tpu_custom_call.1} parent=1 // pred_fallthru
      _
    // Predicated region
    $region18: #{tpu_custom_call.1} parent=1 // pred_check
      _
    $region19: #{tpu_custom_call.1} parent=1 // pred_check_branch
      %55 = sbr.rel (0) target = $region21
    $region20: #{tpu_custom_call.1} parent=1 // pred_region
      _
    $region21: #{tpu_custom_call.1} parent=1 // pred_fallthru
      _
    // Predicated region
    $region22: #{tpu_custom_call.1} parent=1 // pred_check
      _
    $region23: #{tpu_custom_call.1} parent=1 // pred_check_branch
      %57 = sbr.rel (0) target = $region25
    $region24: #{tpu_custom_call.1} parent=1 // pred_region
      _
    $region25: #{tpu_custom_call.1} parent=1 // pred_fallthru
      _
    // Predicated region
    $region26: #{tpu_custom_call.1} parent=1 // pred_check
      _
    $region27: #{tpu_custom_call.1} parent=1 // pred_check_branch
      %59 = sbr.rel (0) target = $region29
    $region28: #{tpu_custom_call.1} parent=1 // pred_region
      %60 = dma.done [#allocation3], 256
    $region29: #{tpu_custom_call.1} parent=1 // pred_fallthru
      _
    // Predicated region
    $region30: #{tpu_custom_call.1} parent=1 // pred_check
      _
    $region31: #{tpu_custom_call.1} parent=1 // pred_check_branch
      %62 = sbr.rel (0) target = $region33
    $region32: #{tpu_custom_call.1} parent=1 // pred_region
      %63 = dma.done [#allocation6], 8192
    $region33: #{tpu_custom_call.1} parent=1 // pred_fallthru
      _
    // Predicated region
    $region34: #{tpu_custom_call.1} parent=1 // pred_check
      _
    $region35: #{tpu_custom_call.1} parent=1 // pred_check_branch
      %65 = sbr.rel (0) target = $region37
    $region36: #{tpu_custom_call.1} parent=1 // pred_region
      %66 = dma.done [#allocation6], 9216
    $region37: #{tpu_custom_call.1} parent=1 // pred_fallthru
      _
    %v68 = vld [vmem:[#allocation2] sm:$0xff]
    %v69 = vld [vmem:[#allocation2 + $0x8] sm:$0xff]
    %v72 = vcombine.high %v68, %v68
    %v74 = vunpack.c.l.s4 1983009808
    %v75 = vunpack.c.0.s8 %v74
    %v76 = vlaneseq
    %v77 = vshrl.u32 %v76, 7
    %v78 = vsub.s32 %v75, %v77
    %v79 = vrot.slane %v68, %v78
    %v81 = vunpack.c.l.s4 1983009808
    %v82 = vunpack.c.0.s8 %v81
    %v83 = vlaneseq
    %v84 = vshrl.u32 %v83, 7
    %v85 = vsub.s32 %v82, %v84
    %v86 = vrot.slane %v72, %v85
    %v87 = vcombine.high %v79, %v79
    %v88 = vcombine.high %v86, %v86
    %v89 = vcombine.high %v69, %v69
    %v91 = vunpack.c.l.s4 1983009808
    %v92 = vunpack.c.0.s8 %v91
    %v93 = vlaneseq
    %v94 = vshrl.u32 %v93, 7
    %v95 = vsub.s32 %v92, %v94
    %v96 = vrot.slane %v69, %v95
    %v98 = vunpack.c.l.s4 1983009808
    %v99 = vunpack.c.0.s8 %v98
    %v100 = vlaneseq
    %v101 = vshrl.u32 %v100, 7
    %v102 = vsub.s32 %v99, %v101
    %v103 = vrot.slane %v89, %v102
    %v104 = vcombine.high %v96, %v96
    %v105 = vcombine.high %v103, %v103
    %v114 = vpack.c.bf16 %v79, %v79
    %v115 = vpack.c.bf16 %v87, %v87
    %v116 = vpack.c.bf16 %v86, %v86
    %v117 = vpack.c.bf16 %v88, %v88
    %v118 = vpack.c.bf16 %v96, %v96
    %v119 = vpack.c.bf16 %v104, %v104
    %v120 = vpack.c.bf16 %v103, %v103
    %v121 = vpack.c.bf16 %v105, %v105
    %v122 = vld [vmem:[#allocation5] sm:$0xf]
    %v123 = vld [vmem:[#allocation5 + $0x4] sm:$0xf]
    %v124 = vld [vmem:[#allocation5 + $0x8] sm:$0xf]
    %v125 = vld [vmem:[#allocation5 + $0xc] sm:$0xf]
    %v126 = vld [vmem:[#allocation5 + $0x10] sm:$0xf]
    %v127 = vld [vmem:[#allocation5 + $0x14] sm:$0xf]
    %v128 = vld [vmem:[#allocation5 + $0x18] sm:$0xf]
    %v129 = vld [vmem:[#allocation5 + $0x1c] sm:$0xf]
    %v130 = vld [vmem:[#allocation5 + $0x20] sm:$0xf]
    %v131 = vld [vmem:[#allocation5 + $0x24] sm:$0xf]
    %v132 = vld [vmem:[#allocation5 + $0x28] sm:$0xf]
    %v133 = vld [vmem:[#allocation5 + $0x2c] sm:$0xf]
    %v134 = vld [vmem:[#allocation5 + $0x30] sm:$0xf]
    %v135 = vld [vmem:[#allocation5 + $0x34] sm:$0xf]
    %v136 = vld [vmem:[#allocation5 + $0x38] sm:$0xf]
    %v137 = vld [vmem:[#allocation5 + $0x3c] sm:$0xf]
    %v138 = vld [vmem:[#allocation5 + $0x40] sm:$0xf]
    %v139 = vld [vmem:[#allocation5 + $0x44] sm:$0xf]
    %v140 = vld [vmem:[#allocation5 + $0x48] sm:$0xf]
    %v141 = vld [vmem:[#allocation5 + $0x4c] sm:$0xf]
    %v142 = vld [vmem:[#allocation5 + $0x50] sm:$0xf]
    %v143 = vld [vmem:[#allocation5 + $0x54] sm:$0xf]
    %v144 = vld [vmem:[#allocation5 + $0x58] sm:$0xf]
    %v145 = vld [vmem:[#allocation5 + $0x5c] sm:$0xf]
    %v146 = vld [vmem:[#allocation5 + $0x60] sm:$0xf]
    %v147 = vld [vmem:[#allocation5 + $0x64] sm:$0xf]
    %v148 = vld [vmem:[#allocation5 + $0x68] sm:$0xf]
    %v149 = vld [vmem:[#allocation5 + $0x6c] sm:$0xf]
    %v150 = vld [vmem:[#allocation5 + $0x70] sm:$0xf]
    %v151 = vld [vmem:[#allocation5 + $0x74] sm:$0xf]
    %v152 = vld [vmem:[#allocation5 + $0x78] sm:$0xf]
    %v153 = vld [vmem:[#allocation5 + $0x7c] sm:$0xf]
    %v154 = vld [vmem:[#allocation5 + $0x80] sm:$0xf]
    %v155 = vld [vmem:[#allocation5 + $0x84] sm:$0xf]
    %v156 = vld [vmem:[#allocation5 + $0x88] sm:$0xf]
    %v157 = vld [vmem:[#allocation5 + $0x8c] sm:$0xf]
    %v158 = vld [vmem:[#allocation5 + $0x90] sm:$0xf]
    %v159 = vld [vmem:[#allocation5 + $0x94] sm:$0xf]
    %v160 = vld [vmem:[#allocation5 + $0x98] sm:$0xf]
    %v161 = vld [vmem:[#allocation5 + $0x9c] sm:$0xf]
    %v162 = vld [vmem:[#allocation5 + $0xa0] sm:$0xf]
    %v163 = vld [vmem:[#allocation5 + $0xa4] sm:$0xf]
    %v164 = vld [vmem:[#allocation5 + $0xa8] sm:$0xf]
    %v165 = vld [vmem:[#allocation5 + $0xac] sm:$0xf]
    %v166 = vld [vmem:[#allocation5 + $0xb0] sm:$0xf]
    %v167 = vld [vmem:[#allocation5 + $0xb4] sm:$0xf]
    %v168 = vld [vmem:[#allocation5 + $0xb8] sm:$0xf]
    %v169 = vld [vmem:[#allocation5 + $0xbc] sm:$0xf]
    %v170 = vld [vmem:[#allocation5 + $0xc0] sm:$0xf]
    %v171 = vld [vmem:[#allocation5 + $0xc4] sm:$0xf]
    %v172 = vld [vmem:[#allocation5 + $0xc8] sm:$0xf]
    %v173 = vld [vmem:[#allocation5 + $0xcc] sm:$0xf]
    %v174 = vld [vmem:[#allocation5 + $0xd0] sm:$0xf]
    %v175 = vld [vmem:[#allocation5 + $0xd4] sm:$0xf]
    %v176 = vld [vmem:[#allocation5 + $0xd8] sm:$0xf]
    %v177 = vld [vmem:[#allocation5 + $0xdc] sm:$0xf]
    %v178 = vld [vmem:[#allocation5 + $0xe0] sm:$0xf]
    %v179 = vld [vmem:[#allocation5 + $0xe4] sm:$0xf]
    %v180 = vld [vmem:[#allocation5 + $0xe8] sm:$0xf]
    %v181 = vld [vmem:[#allocation5 + $0xec] sm:$0xf]
    %v182 = vld [vmem:[#allocation5 + $0xf0] sm:$0xf]
    %v183 = vld [vmem:[#allocation5 + $0xf4] sm:$0xf]
    %v184 = vld [vmem:[#allocation5 + $0xf8] sm:$0xf]
    %v185 = vld [vmem:[#allocation5 + $0xfc] sm:$0xf]
    %v186 = vld [vmem:[#allocation5 + $0x100] sm:$0xf]
    %v187 = vld [vmem:[#allocation5 + $0x104] sm:$0xf]
    %v188 = vld [vmem:[#allocation5 + $0x108] sm:$0xf]
    %v189 = vld [vmem:[#allocation5 + $0x10c] sm:$0xf]
    %v190 = vld [vmem:[#allocation5 + $0x110] sm:$0xf]
    %v191 = vld [vmem:[#allocation5 + $0x114] sm:$0xf]
    %v192 = vld [vmem:[#allocation5 + $0x118] sm:$0xf]
    %v193 = vld [vmem:[#allocation5 + $0x11c] sm:$0xf]
    %v194 = vld [vmem:[#allocation5 + $0x120] sm:$0xf]
    %v195 = vld [vmem:[#allocation5 + $0x124] sm:$0xf]
    %v196 = vld [vmem:[#allocation5 + $0x128] sm:$0xf]
    %v197 = vld [vmem:[#allocation5 + $0x12c] sm:$0xf]
    %v198 = vld [vmem:[#allocation5 + $0x130] sm:$0xf]
    %v199 = vld [vmem:[#allocation5 + $0x134] sm:$0xf]
    %v200 = vld [vmem:[#allocation5 + $0x138] sm:$0xf]
    %v201 = vld [vmem:[#allocation5 + $0x13c] sm:$0xf]
    %v202 = vld [vmem:[#allocation5 + $0x140] sm:$0xf]
    %v203 = vld [vmem:[#allocation5 + $0x144] sm:$0xf]
    %v204 = vld [vmem:[#allocation5 + $0x148] sm:$0xf]
    %v205 = vld [vmem:[#allocation5 + $0x14c] sm:$0xf]
    %v206 = vld [vmem:[#allocation5 + $0x150] sm:$0xf]
    %v207 = vld [vmem:[#allocation5 + $0x154] sm:$0xf]
    %v208 = vld [vmem:[#allocation5 + $0x158] sm:$0xf]
    %v209 = vld [vmem:[#allocation5 + $0x15c] sm:$0xf]
    %v210 = vld [vmem:[#allocation5 + $0x160] sm:$0xf]
    %v211 = vld [vmem:[#allocation5 + $0x164] sm:$0xf]
    %v212 = vld [vmem:[#allocation5 + $0x168] sm:$0xf]
    %v213 = vld [vmem:[#allocation5 + $0x16c] sm:$0xf]
    %v214 = vld [vmem:[#allocation5 + $0x170] sm:$0xf]
    %v215 = vld [vmem:[#allocation5 + $0x174] sm:$0xf]
    %v216 = vld [vmem:[#allocation5 + $0x178] sm:$0xf]
    %v217 = vld [vmem:[#allocation5 + $0x17c] sm:$0xf]
    %v218 = vld [vmem:[#allocation5 + $0x180] sm:$0xf]
    %v219 = vld [vmem:[#allocation5 + $0x184] sm:$0xf]
    %v220 = vld [vmem:[#allocation5 + $0x188] sm:$0xf]
    %v221 = vld [vmem:[#allocation5 + $0x18c] sm:$0xf]
    %v222 = vld [vmem:[#allocation5 + $0x190] sm:$0xf]
    %v223 = vld [vmem:[#allocation5 + $0x194] sm:$0xf]
    %v224 = vld [vmem:[#allocation5 + $0x198] sm:$0xf]
    %v225 = vld [vmem:[#allocation5 + $0x19c] sm:$0xf]
    %v226 = vld [vmem:[#allocation5 + $0x1a0] sm:$0xf]
    %v227 = vld [vmem:[#allocation5 + $0x1a4] sm:$0xf]
    %v228 = vld [vmem:[#allocation5 + $0x1a8] sm:$0xf]
    %v229 = vld [vmem:[#allocation5 + $0x1ac] sm:$0xf]
    %v230 = vld [vmem:[#allocation5 + $0x1b0] sm:$0xf]
    %v231 = vld [vmem:[#allocation5 + $0x1b4] sm:$0xf]
    %v232 = vld [vmem:[#allocation5 + $0x1b8] sm:$0xf]
    %v233 = vld [vmem:[#allocation5 + $0x1bc] sm:$0xf]
    %v234 = vld [vmem:[#allocation5 + $0x1c0] sm:$0xf]
    %v235 = vld [vmem:[#allocation5 + $0x1c4] sm:$0xf]
    %v236 = vld [vmem:[#allocation5 + $0x1c8] sm:$0xf]
    %v237 = vld [vmem:[#allocation5 + $0x1cc] sm:$0xf]
    %v238 = vld [vmem:[#allocation5 + $0x1d0] sm:$0xf]
    %v239 = vld [vmem:[#allocation5 + $0x1d4] sm:$0xf]
    %v240 = vld [vmem:[#allocation5 + $0x1d8] sm:$0xf]
    %v241 = vld [vmem:[#allocation5 + $0x1dc] sm:$0xf]
    %v242 = vld [vmem:[#allocation5 + $0x1e0] sm:$0xf]
    %v243 = vld [vmem:[#allocation5 + $0x1e4] sm:$0xf]
    %v244 = vld [vmem:[#allocation5 + $0x1e8] sm:$0xf]
    %v245 = vld [vmem:[#allocation5 + $0x1ec] sm:$0xf]
    %v246 = vld [vmem:[#allocation5 + $0x1f0] sm:$0xf]
    %v247 = vld [vmem:[#allocation5 + $0x1f4] sm:$0xf]
    %v248 = vld [vmem:[#allocation5 + $0x1f8] sm:$0xf]
    %v249 = vld [vmem:[#allocation5 + $0x1fc] sm:$0xf]
    %v250 = vld [vmem:[%s2] sm:$0x1]
    %v252 = vlaneseq
    %v253 = vshrl.u32 %v252, 7
    %v254 = vsub.s32 0, %v253
    %v255 = vrot.slane %v250, %v254
    %v385 = vunpack.c.l.b16 %v122
    %v386 = vunpack.c.l.b16 %v123
    %v387 = vunpack.c.l.b16 %v124
    %v388 = vunpack.c.l.b16 %v125
    %v389 = vunpack.c.l.b16 %v126
    %v390 = vunpack.c.l.b16 %v127
    %v391 = vunpack.c.l.b16 %v128
    %v392 = vunpack.c.l.b16 %v129
    %v393 = vunpack.c.l.b16 %v130
    %v394 = vunpack.c.l.b16 %v131
    %v395 = vunpack.c.l.b16 %v132
    %v396 = vunpack.c.l.b16 %v133
    %v397 = vunpack.c.l.b16 %v134
    %v398 = vunpack.c.l.b16 %v135
    %v399 = vunpack.c.l.b16 %v136
    %v400 = vunpack.c.l.b16 %v137
    %v401 = vunpack.c.l.b16 %v138
    %v402 = vunpack.c.l.b16 %v139
    %v403 = vunpack.c.l.b16 %v140
    %v404 = vunpack.c.l.b16 %v141
    %v405 = vunpack.c.l.b16 %v142
    %v406 = vunpack.c.l.b16 %v143
    %v407 = vunpack.c.l.b16 %v144
    %v408 = vunpack.c.l.b16 %v145
    %v409 = vunpack.c.l.b16 %v146
    %v410 = vunpack.c.l.b16 %v147
    %v411 = vunpack.c.l.b16 %v148
    %v412 = vunpack.c.l.b16 %v149
    %v413 = vunpack.c.l.b16 %v150
    %v414 = vunpack.c.l.b16 %v151
    %v415 = vunpack.c.l.b16 %v152
    %v416 = vunpack.c.l.b16 %v153
    %v417 = vunpack.c.l.b16 %v154
    %v418 = vunpack.c.l.b16 %v155
    %v419 = vunpack.c.l.b16 %v156
    %v420 = vunpack.c.l.b16 %v157
    %v421 = vunpack.c.l.b16 %v158
    %v422 = vunpack.c.l.b16 %v159
    %v423 = vunpack.c.l.b16 %v160
    %v424 = vunpack.c.l.b16 %v161
    %v425 = vunpack.c.l.b16 %v162
    %v426 = vunpack.c.l.b16 %v163
    %v427 = vunpack.c.l.b16 %v164
    %v428 = vunpack.c.l.b16 %v165
    %v429 = vunpack.c.l.b16 %v166
    %v430 = vunpack.c.l.b16 %v167
    %v431 = vunpack.c.l.b16 %v168
    %v432 = vunpack.c.l.b16 %v169
    %v433 = vunpack.c.l.b16 %v170
    %v434 = vunpack.c.l.b16 %v171
    %v435 = vunpack.c.l.b16 %v172
    %v436 = vunpack.c.l.b16 %v173
    %v437 = vunpack.c.l.b16 %v174
    %v438 = vunpack.c.l.b16 %v175
    %v439 = vunpack.c.l.b16 %v176
    %v440 = vunpack.c.l.b16 %v177
    %v441 = vunpack.c.l.b16 %v178
    %v442 = vunpack.c.l.b16 %v179
    %v443 = vunpack.c.l.b16 %v180
    %v444 = vunpack.c.l.b16 %v181
    %v445 = vunpack.c.l.b16 %v182
    %v446 = vunpack.c.l.b16 %v183
    %v447 = vunpack.c.l.b16 %v184
    %v448 = vunpack.c.l.b16 %v185
    %v449 = vunpack.c.l.b16 %v186
    %v450 = vunpack.c.l.b16 %v187
    %v451 = vunpack.c.l.b16 %v188
    %v452 = vunpack.c.l.b16 %v189
    %v453 = vunpack.c.l.b16 %v190
    %v454 = vunpack.c.l.b16 %v191
    %v455 = vunpack.c.l.b16 %v192
    %v456 = vunpack.c.l.b16 %v193
    %v457 = vunpack.c.l.b16 %v194
    %v458 = vunpack.c.l.b16 %v195
    %v459 = vunpack.c.l.b16 %v196
    %v460 = vunpack.c.l.b16 %v197
    %v461 = vunpack.c.l.b16 %v198
    %v462 = vunpack.c.l.b16 %v199
    %v463 = vunpack.c.l.b16 %v200
    %v464 = vunpack.c.l.b16 %v201
    %v465 = vunpack.c.l.b16 %v202
    %v466 = vunpack.c.l.b16 %v203
    %v467 = vunpack.c.l.b16 %v204
    %v468 = vunpack.c.l.b16 %v205
    %v469 = vunpack.c.l.b16 %v206
    %v470 = vunpack.c.l.b16 %v207
    %v471 = vunpack.c.l.b16 %v208
    %v472 = vunpack.c.l.b16 %v209
    %v473 = vunpack.c.l.b16 %v210
    %v474 = vunpack.c.l.b16 %v211
    %v475 = vunpack.c.l.b16 %v212
    %v476 = vunpack.c.l.b16 %v213
    %v477 = vunpack.c.l.b16 %v214
    %v478 = vunpack.c.l.b16 %v215
    %v479 = vunpack.c.l.b16 %v216
    %v480 = vunpack.c.l.b16 %v217
    %v481 = vunpack.c.l.b16 %v218
    %v482 = vunpack.c.l.b16 %v219
    %v483 = vunpack.c.l.b16 %v220
    %v484 = vunpack.c.l.b16 %v221
    %v485 = vunpack.c.l.b16 %v222
    %v486 = vunpack.c.l.b16 %v223
    %v487 = vunpack.c.l.b16 %v224
    %v488 = vunpack.c.l.b16 %v225
    %v489 = vunpack.c.l.b16 %v226
    %v490 = vunpack.c.l.b16 %v227
    %v491 = vunpack.c.l.b16 %v228
    %v492 = vunpack.c.l.b16 %v229
    %v493 = vunpack.c.l.b16 %v230
    %v494 = vunpack.c.l.b16 %v231
    %v495 = vunpack.c.l.b16 %v232
    %v496 = vunpack.c.l.b16 %v233
    %v497 = vunpack.c.l.b16 %v234
    %v498 = vunpack.c.l.b16 %v235
    %v499 = vunpack.c.l.b16 %v236
    %v500 = vunpack.c.l.b16 %v237
    %v501 = vunpack.c.l.b16 %v238
    %v502 = vunpack.c.l.b16 %v239
    %v503 = vunpack.c.l.b16 %v240
    %v504 = vunpack.c.l.b16 %v241
    %v505 = vunpack.c.l.b16 %v242
    %v506 = vunpack.c.l.b16 %v243
    %v507 = vunpack.c.l.b16 %v244
    %v508 = vunpack.c.l.b16 %v245
    %v509 = vunpack.c.l.b16 %v246
    %v510 = vunpack.c.l.b16 %v247
    %v511 = vunpack.c.l.b16 %v248
    %v512 = vunpack.c.l.b16 %v249
    %v513 = vpack.c.b16 %v386, %v385
    %v514 = vpack.c.b16 %v388, %v387
    %v515 = vpack.c.b16 %v390, %v389
    %v516 = vpack.c.b16 %v392, %v391
    %v517 = vpack.c.b16 %v394, %v393
    %v518 = vpack.c.b16 %v396, %v395
    %v519 = vpack.c.b16 %v398, %v397
    %v520 = vpack.c.b16 %v400, %v399
    %v521 = vpack.c.b16 %v402, %v401
    %v522 = vpack.c.b16 %v404, %v403
    %v523 = vpack.c.b16 %v406, %v405
    %v524 = vpack.c.b16 %v408, %v407
    %v525 = vpack.c.b16 %v410, %v409
    %v526 = vpack.c.b16 %v412, %v411
    %v527 = vpack.c.b16 %v414, %v413
    %v528 = vpack.c.b16 %v416, %v415
    %v529 = vpack.c.b16 %v418, %v417
    %v530 = vpack.c.b16 %v420, %v419
    %v531 = vpack.c.b16 %v422, %v421
    %v532 = vpack.c.b16 %v424, %v423
    %v533 = vpack.c.b16 %v426, %v425
    %v534 = vpack.c.b16 %v428, %v427
    %v535 = vpack.c.b16 %v430, %v429
    %v536 = vpack.c.b16 %v432, %v431
    %v537 = vpack.c.b16 %v434, %v433
    %v538 = vpack.c.b16 %v436, %v435
    %v539 = vpack.c.b16 %v438, %v437
    %v540 = vpack.c.b16 %v440, %v439
    %v541 = vpack.c.b16 %v442, %v441
    %v542 = vpack.c.b16 %v444, %v443
    %v543 = vpack.c.b16 %v446, %v445
    %v544 = vpack.c.b16 %v448, %v447
    %v545 = vpack.c.b16 %v450, %v449
    %v546 = vpack.c.b16 %v452, %v451
    %v547 = vpack.c.b16 %v454, %v453
    %v548 = vpack.c.b16 %v456, %v455
    %v549 = vpack.c.b16 %v458, %v457
    %v550 = vpack.c.b16 %v460, %v459
    %v551 = vpack.c.b16 %v462, %v461
    %v552 = vpack.c.b16 %v464, %v463
    %v553 = vpack.c.b16 %v466, %v465
    %v554 = vpack.c.b16 %v468, %v467
    %v555 = vpack.c.b16 %v470, %v469
    %v556 = vpack.c.b16 %v472, %v471
    %v557 = vpack.c.b16 %v474, %v473
    %v558 = vpack.c.b16 %v476, %v475
    %v559 = vpack.c.b16 %v478, %v477
    %v560 = vpack.c.b16 %v480, %v479
    %v561 = vpack.c.b16 %v482, %v481
    %v562 = vpack.c.b16 %v484, %v483
    %v563 = vpack.c.b16 %v486, %v485
    %v564 = vpack.c.b16 %v488, %v487
    %v565 = vpack.c.b16 %v490, %v489
    %v566 = vpack.c.b16 %v492, %v491
    %v567 = vpack.c.b16 %v494, %v493
    %v568 = vpack.c.b16 %v496, %v495
    %v569 = vpack.c.b16 %v498, %v497
    %v570 = vpack.c.b16 %v500, %v499
    %v571 = vpack.c.b16 %v502, %v501
    %v572 = vpack.c.b16 %v504, %v503
    %v573 = vpack.c.b16 %v506, %v505
    %v574 = vpack.c.b16 %v508, %v507
    %v575 = vpack.c.b16 %v510, %v509
    %v576 = vpack.c.b16 %v512, %v511
    %641 = vmatprep.subr.bf16.mxu0 0
    %642 = vmatpush1.bf16.msra.mxu0 %v513
    %643 = vmatprep.subr.bf16.mxu0 0
    %644 = vmatpush1.bf16.msra.mxu0 %v514
    %645 = vmatprep.subr.bf16.mxu0 0
    %646 = vmatpush1.bf16.msra.mxu0 %v515
    %647 = vmatprep.subr.bf16.mxu0 0
    %648 = vmatpush1.bf16.msra.mxu0 %v516
    %649 = vmatprep.subr.bf16.mxu0 0
    %650 = vmatpush1.bf16.msra.mxu0 %v517
    %651 = vmatprep.subr.bf16.mxu0 0
    %652 = vmatpush1.bf16.msra.mxu0 %v518
    %653 = vmatprep.subr.bf16.mxu0 0
    %654 = vmatpush1.bf16.msra.mxu0 %v519
    %655 = vmatprep.subr.bf16.mxu0 0
    %656 = vmatpush1.bf16.msra.mxu0 %v520
    %657 = vmatprep.subr.bf16.mxu0 0
    %658 = vmatpush1.bf16.msra.mxu0 %v521
    %659 = vmatprep.subr.bf16.mxu0 0
    %660 = vmatpush1.bf16.msra.mxu0 %v522
    %661 = vmatprep.subr.bf16.mxu0 0
    %662 = vmatpush1.bf16.msra.mxu0 %v523
    %663 = vmatprep.subr.bf16.mxu0 0
    %664 = vmatpush1.bf16.msra.mxu0 %v524
    %665 = vmatprep.subr.bf16.mxu0 0
    %666 = vmatpush1.bf16.msra.mxu0 %v525
    %667 = vmatprep.subr.bf16.mxu0 0
    %668 = vmatpush1.bf16.msra.mxu0 %v526
    %669 = vmatprep.subr.bf16.mxu0 0
    %670 = vmatpush1.bf16.msra.mxu0 %v527
    %671 = vmatprep.subr.bf16.mxu0 0
    %672 = vmatpush1.bf16.msra.mxu0 %v528
    %673 = vmatprep.mubr.bf16.mxu0 %v115
    %674 = vmatmul.mubr.bf16.gmra.mrb[0].mxu0 %v114
    %v675 = vpop.f32.mrb[0].mxu0
    %v676 = vadd.f32 %v255, %v675
    %v677 = vpop.f32.mrb[0].mxu0
    %v678 = vpop.f32.mrb[0].mxu0
    %v679 = vpop.f32.mrb[0].mxu0
    %680 = vdwg.mxu0
    %681 = vmatprep.subr.bf16.mxu0 0
    %682 = vmatpush1.bf16.msra.mxu0 %v529
    %683 = vmatprep.subr.bf16.mxu0 0
    %684 = vmatpush1.bf16.msra.mxu0 %v530
    %685 = vmatprep.subr.bf16.mxu0 0
    %686 = vmatpush1.bf16.msra.mxu0 %v531
    %687 = vmatprep.subr.bf16.mxu0 0
    %688 = vmatpush1.bf16.msra.mxu0 %v532
    %689 = vmatprep.subr.bf16.mxu0 0
    %690 = vmatpush1.bf16.msra.mxu0 %v533
    %691 = vmatprep.subr.bf16.mxu0 0
    %692 = vmatpush1.bf16.msra.mxu0 %v534
    %693 = vmatprep.subr.bf16.mxu0 0
    %694 = vmatpush1.bf16.msra.mxu0 %v535
    %695 = vmatprep.subr.bf16.mxu0 0
    %696 = vmatpush1.bf16.msra.mxu0 %v536
    %697 = vmatprep.subr.bf16.mxu0 0
    %698 = vmatpush1.bf16.msra.mxu0 %v537
    %699 = vmatprep.subr.bf16.mxu0 0
    %700 = vmatpush1.bf16.msra.mxu0 %v538
    %701 = vmatprep.subr.bf16.mxu0 0
    %702 = vmatpush1.bf16.msra.mxu0 %v539
    %703 = vmatprep.subr.bf16.mxu0 0
    %704 = vmatpush1.bf16.msra.mxu0 %v540
    %705 = vmatprep.subr.bf16.mxu0 0
    %706 = vmatpush1.bf16.msra.mxu0 %v541
    %707 = vmatprep.subr.bf16.mxu0 0
    %708 = vmatpush1.bf16.msra.mxu0 %v542
    %709 = vmatprep.subr.bf16.mxu0 0
    %710 = vmatpush1.bf16.msra.mxu0 %v543
    %711 = vmatprep.subr.bf16.mxu0 0
    %712 = vmatpush1.bf16.msra.mxu0 %v544
    %713 = vmatprep.mubr.bf16.mxu0 %v117
    %714 = vmatmul.mubr.bf16.gmra.mrb[0].mxu0 %v116
    %v715 = vpop.f32.mrb[0].mxu0
    %v716 = vadd.f32 %v676, %v715
    %v717 = vpop.f32.mrb[0].mxu0
    %v718 = vpop.f32.mrb[0].mxu0
    %v719 = vpop.f32.mrb[0].mxu0
    %720 = vdwg.mxu0
    %721 = vmatprep.subr.bf16.mxu0 0
    %722 = vmatpush1.bf16.msra.mxu0 %v545
    %723 = vmatprep.subr.bf16.mxu0 0
    %724 = vmatpush1.bf16.msra.mxu0 %v546
    %725 = vmatprep.subr.bf16.mxu0 0
    %726 = vmatpush1.bf16.msra.mxu0 %v547
    %727 = vmatprep.subr.bf16.mxu0 0
    %728 = vmatpush1.bf16.msra.mxu0 %v548
    %729 = vmatprep.subr.bf16.mxu0 0
    %730 = vmatpush1.bf16.msra.mxu0 %v549
    %731 = vmatprep.subr.bf16.mxu0 0
    %732 = vmatpush1.bf16.msra.mxu0 %v550
    %733 = vmatprep.subr.bf16.mxu0 0
    %734 = vmatpush1.bf16.msra.mxu0 %v551
    %735 = vmatprep.subr.bf16.mxu0 0
    %736 = vmatpush1.bf16.msra.mxu0 %v552
    %737 = vmatprep.subr.bf16.mxu0 0
    %738 = vmatpush1.bf16.msra.mxu0 %v553
    %739 = vmatprep.subr.bf16.mxu0 0
    %740 = vmatpush1.bf16.msra.mxu0 %v554
    %741 = vmatprep.subr.bf16.mxu0 0
    %742 = vmatpush1.bf16.msra.mxu0 %v555
    %743 = vmatprep.subr.bf16.mxu0 0
    %744 = vmatpush1.bf16.msra.mxu0 %v556
    %745 = vmatprep.subr.bf16.mxu0 0
    %746 = vmatpush1.bf16.msra.mxu0 %v557
    %747 = vmatprep.subr.bf16.mxu0 0
    %748 = vmatpush1.bf16.msra.mxu0 %v558
    %749 = vmatprep.subr.bf16.mxu0 0
    %750 = vmatpush1.bf16.msra.mxu0 %v559
    %751 = vmatprep.subr.bf16.mxu0 0
    %752 = vmatpush1.bf16.msra.mxu0 %v560
    %753 = vmatprep.mubr.bf16.mxu0 %v119
    %754 = vmatmul.mubr.bf16.gmra.mrb[0].mxu0 %v118
    %v755 = vpop.f32.mrb[0].mxu0
    %v756 = vadd.f32 %v716, %v755
    %v757 = vpop.f32.mrb[0].mxu0
    %v758 = vpop.f32.mrb[0].mxu0
    %v759 = vpop.f32.mrb[0].mxu0
    %760 = vdwg.mxu0
    %761 = vmatprep.subr.bf16.mxu0 0
    %762 = vmatpush1.bf16.msra.mxu0 %v561
    %763 = vmatprep.subr.bf16.mxu0 0
    %764 = vmatpush1.bf16.msra.mxu0 %v562
    %765 = vmatprep.subr.bf16.mxu0 0
    %766 = vmatpush1.bf16.msra.mxu0 %v563
    %767 = vmatprep.subr.bf16.mxu0 0
    %768 = vmatpush1.bf16.msra.mxu0 %v564
    %769 = vmatprep.subr.bf16.mxu0 0
    %770 = vmatpush1.bf16.msra.mxu0 %v565
    %771 = vmatprep.subr.bf16.mxu0 0
    %772 = vmatpush1.bf16.msra.mxu0 %v566
    %773 = vmatprep.subr.bf16.mxu0 0
    %774 = vmatpush1.bf16.msra.mxu0 %v567
    %775 = vmatprep.subr.bf16.mxu0 0
    %776 = vmatpush1.bf16.msra.mxu0 %v568
    %777 = vmatprep.subr.bf16.mxu0 0
    %778 = vmatpush1.bf16.msra.mxu0 %v569
    %779 = vmatprep.subr.bf16.mxu0 0
    %780 = vmatpush1.bf16.msra.mxu0 %v570
    %781 = vmatprep.subr.bf16.mxu0 0
    %782 = vmatpush1.bf16.msra.mxu0 %v571
    %783 = vmatprep.subr.bf16.mxu0 0
    %784 = vmatpush1.bf16.msra.mxu0 %v572
    %785 = vmatprep.subr.bf16.mxu0 0
    %786 = vmatpush1.bf16.msra.mxu0 %v573
    %787 = vmatprep.subr.bf16.mxu0 0
    %788 = vmatpush1.bf16.msra.mxu0 %v574
    %789 = vmatprep.subr.bf16.mxu0 0
    %790 = vmatpush1.bf16.msra.mxu0 %v575
    %791 = vmatprep.subr.bf16.mxu0 0
    %792 = vmatpush1.bf16.msra.mxu0 %v576
    %793 = vmatprep.mubr.bf16.mxu0 %v121
    %794 = vmatmul.mubr.bf16.gmra.mrb[0].mxu0 %v120
    %v795 = vpop.f32.mrb[0].mxu0
    %v796 = vadd.f32 %v756, %v795
    %v797 = vpop.f32.mrb[0].mxu0
    %v798 = vpop.f32.mrb[0].mxu0
    %v799 = vpop.f32.mrb[0].mxu0
    %800 = vdwg.mxu0
    %801 = vst [vmem:[#allocation9] sm:$0x3] %v796
    %v802 = vpack.c.bf16 %v796, %v796
    %v803 = vld [vmem:[#allocation7] sm:$0xff]
    %v804 = vld [vmem:[#allocation7 + $0x8] sm:$0xff]
    %v805 = vld [vmem:[#allocation7 + $0x10] sm:$0xff]
    %v806 = vld [vmem:[#allocation7 + $0x18] sm:$0xff]
    %v807 = vld [vmem:[#allocation7 + $0x20] sm:$0xf]
    %v808 = vld [vmem:[#allocation7 + $0x24] sm:$0xff]
    %v809 = vld [vmem:[#allocation7 + $0x2c] sm:$0xff]
    %v810 = vld [vmem:[#allocation7 + $0x34] sm:$0xff]
    %v811 = vld [vmem:[#allocation7 + $0x3c] sm:$0xff]
    %v812 = vld [vmem:[#allocation7 + $0x44] sm:$0xf]
    %v813 = vld [vmem:[#allocation7 + $0x48] sm:$0xff]
    %v814 = vld [vmem:[#allocation7 + $0x50] sm:$0xff]
    %v815 = vld [vmem:[#allocation7 + $0x58] sm:$0xff]
    %v816 = vld [vmem:[#allocation7 + $0x60] sm:$0xff]
    %v817 = vld [vmem:[#allocation7 + $0x68] sm:$0xf]
    %v818 = vld [vmem:[#allocation7 + $0x6c] sm:$0xff]
    %v819 = vld [vmem:[#allocation7 + $0x74] sm:$0xff]
    %v820 = vld [vmem:[#allocation7 + $0x7c] sm:$0xff]
    %v821 = vld [vmem:[#allocation7 + $0x84] sm:$0xff]
    %v822 = vld [vmem:[#allocation7 + $0x8c] sm:$0xf]
    %v823 = vld [vmem:[#allocation7 + $0x90] sm:$0xff]
    %v824 = vld [vmem:[#allocation7 + $0x98] sm:$0xff]
    %v825 = vld [vmem:[#allocation7 + $0xa0] sm:$0xff]
    %v826 = vld [vmem:[#allocation7 + $0xa8] sm:$0xff]
    %v827 = vld [vmem:[#allocation7 + $0xb0] sm:$0xf]
    %v828 = vld [vmem:[#allocation7 + $0xb4] sm:$0xff]
    %v829 = vld [vmem:[#allocation7 + $0xbc] sm:$0xff]
    %v830 = vld [vmem:[#allocation7 + $0xc4] sm:$0xff]
    %v831 = vld [vmem:[#allocation7 + $0xcc] sm:$0xff]
    %v832 = vld [vmem:[#allocation7 + $0xd4] sm:$0xf]
    %v833 = vld [vmem:[#allocation7 + $0xd8] sm:$0xff]
    %v834 = vld [vmem:[#allocation7 + $0xe0] sm:$0xff]
    %v835 = vld [vmem:[#allocation7 + $0xe8] sm:$0xff]
    %v836 = vld [vmem:[#allocation7 + $0xf0] sm:$0xff]
    %v837 = vld [vmem:[#allocation7 + $0xf8] sm:$0xf]
    %v838 = vld [vmem:[#allocation7 + $0xfc] sm:$0xff]
    %v839 = vld [vmem:[#allocation7 + $0x104] sm:$0xff]
    %v840 = vld [vmem:[#allocation7 + $0x10c] sm:$0xff]
    %v841 = vld [vmem:[#allocation7 + $0x114] sm:$0xff]
    %v842 = vld [vmem:[#allocation7 + $0x11c] sm:$0xf]
    %v843 = vld [vmem:[#allocation7 + $0x120] sm:$0xff]
    %v844 = vld [vmem:[#allocation7 + $0x128] sm:$0xff]
    %v845 = vld [vmem:[#allocation7 + $0x130] sm:$0xff]
    %v846 = vld [vmem:[#allocation7 + $0x138] sm:$0xff]
    %v847 = vld [vmem:[#allocation7 + $0x140] sm:$0xf]
    %v848 = vld [vmem:[#allocation7 + $0x144] sm:$0xff]
    %v849 = vld [vmem:[#allocation7 + $0x14c] sm:$0xff]
    %v850 = vld [vmem:[#allocation7 + $0x154] sm:$0xff]
    %v851 = vld [vmem:[#allocation7 + $0x15c] sm:$0xff]
    %v852 = vld [vmem:[#allocation7 + $0x164] sm:$0xf]
    %v853 = vld [vmem:[#allocation7 + $0x168] sm:$0xff]
    %v854 = vld [vmem:[#allocation7 + $0x170] sm:$0xff]
    %v855 = vld [vmem:[#allocation7 + $0x178] sm:$0xff]
    %v856 = vld [vmem:[#allocation7 + $0x180] sm:$0xff]
    %v857 = vld [vmem:[#allocation7 + $0x188] sm:$0xf]
    %v858 = vld [vmem:[#allocation7 + $0x18c] sm:$0xff]
    %v859 = vld [vmem:[#allocation7 + $0x194] sm:$0xff]
    %v860 = vld [vmem:[#allocation7 + $0x19c] sm:$0xff]
    %v861 = vld [vmem:[#allocation7 + $0x1a4] sm:$0xff]
    %v862 = vld [vmem:[#allocation7 + $0x1ac] sm:$0xf]
    %v863 = vld [vmem:[#allocation7 + $0x1b0] sm:$0xff]
    %v864 = vld [vmem:[#allocation7 + $0x1b8] sm:$0xff]
    %v865 = vld [vmem:[#allocation7 + $0x1c0] sm:$0xff]
    %v866 = vld [vmem:[#allocation7 + $0x1c8] sm:$0xff]
    %v867 = vld [vmem:[#allocation7 + $0x1d0] sm:$0xf]
    %v868 = vld [vmem:[#allocation7 + $0x1d4] sm:$0xff]
    %v869 = vld [vmem:[#allocation7 + $0x1dc] sm:$0xff]
    %v870 = vld [vmem:[#allocation7 + $0x1e4] sm:$0xff]
    %v871 = vld [vmem:[#allocation7 + $0x1ec] sm:$0xff]
    %v872 = vld [vmem:[#allocation7 + $0x1f4] sm:$0xf]
    %v873 = vld [vmem:[#allocation7 + $0x1f8] sm:$0xff]
    %v874 = vld [vmem:[#allocation7 + $0x200] sm:$0xff]
    %v875 = vld [vmem:[#allocation7 + $0x208] sm:$0xff]
    %v876 = vld [vmem:[#allocation7 + $0x210] sm:$0xff]
    %v877 = vld [vmem:[#allocation7 + $0x218] sm:$0xf]
    %v878 = vld [vmem:[#allocation7 + $0x21c] sm:$0xff]
    %v879 = vld [vmem:[#allocation7 + $0x224] sm:$0xff]
    %v880 = vld [vmem:[#allocation7 + $0x22c] sm:$0xff]
    %v881 = vld [vmem:[#allocation7 + $0x234] sm:$0xff]
    %v882 = vld [vmem:[#allocation7 + $0x23c] sm:$0xf]
    %v963 = vunpack.c.l.b16 %v803
    %v964 = vunpack.c.h.b16 %v803
    %v965 = vunpack.c.l.b16 %v804
    %v966 = vunpack.c.h.b16 %v804
    %v967 = vunpack.c.l.b16 %v805
    %v968 = vunpack.c.h.b16 %v805
    %v969 = vunpack.c.l.b16 %v806
    %v970 = vunpack.c.h.b16 %v806
    %v971 = vunpack.c.l.b16 %v807
    %v972 = vunpack.c.l.b16 %v808
    %v973 = vunpack.c.h.b16 %v808
    %v974 = vunpack.c.l.b16 %v809
    %v975 = vunpack.c.h.b16 %v809
    %v976 = vunpack.c.l.b16 %v810
    %v977 = vunpack.c.h.b16 %v810
    %v978 = vunpack.c.l.b16 %v811
    %v979 = vunpack.c.h.b16 %v811
    %v980 = vunpack.c.l.b16 %v812
    %v981 = vunpack.c.l.b16 %v813
    %v982 = vunpack.c.h.b16 %v813
    %v983 = vunpack.c.l.b16 %v814
    %v984 = vunpack.c.h.b16 %v814
    %v985 = vunpack.c.l.b16 %v815
    %v986 = vunpack.c.h.b16 %v815
    %v987 = vunpack.c.l.b16 %v816
    %v988 = vunpack.c.h.b16 %v816
    %v989 = vunpack.c.l.b16 %v817
    %v990 = vunpack.c.l.b16 %v818
    %v991 = vunpack.c.h.b16 %v818
    %v992 = vunpack.c.l.b16 %v819
    %v993 = vunpack.c.h.b16 %v819
    %v994 = vunpack.c.l.b16 %v820
    %v995 = vunpack.c.h.b16 %v820
    %v996 = vunpack.c.l.b16 %v821
    %v997 = vunpack.c.h.b16 %v821
    %v998 = vunpack.c.l.b16 %v822
    %v999 = vunpack.c.l.b16 %v823
    %v1000 = vunpack.c.h.b16 %v823
    %v1001 = vunpack.c.l.b16 %v824
    %v1002 = vunpack.c.h.b16 %v824
    %v1003 = vunpack.c.l.b16 %v825
    %v1004 = vunpack.c.h.b16 %v825
    %v1005 = vunpack.c.l.b16 %v826
    %v1006 = vunpack.c.h.b16 %v826
    %v1007 = vunpack.c.l.b16 %v827
    %v1008 = vunpack.c.l.b16 %v828
    %v1009 = vunpack.c.h.b16 %v828
    %v1010 = vunpack.c.l.b16 %v829
    %v1011 = vunpack.c.h.b16 %v829
    %v1012 = vunpack.c.l.b16 %v830
    %v1013 = vunpack.c.h.b16 %v830
    %v1014 = vunpack.c.l.b16 %v831
    %v1015 = vunpack.c.h.b16 %v831
    %v1016 = vunpack.c.l.b16 %v832
    %v1017 = vunpack.c.l.b16 %v833
    %v1018 = vunpack.c.h.b16 %v833
    %v1019 = vunpack.c.l.b16 %v834
    %v1020 = vunpack.c.h.b16 %v834
    %v1021 = vunpack.c.l.b16 %v835
    %v1022 = vunpack.c.h.b16 %v835
    %v1023 = vunpack.c.l.b16 %v836
    %v1024 = vunpack.c.h.b16 %v836
    %v1025 = vunpack.c.l.b16 %v837
    %v1026 = vunpack.c.l.b16 %v838
    %v1027 = vunpack.c.h.b16 %v838
    %v1028 = vunpack.c.l.b16 %v839
    %v1029 = vunpack.c.h.b16 %v839
    %v1030 = vunpack.c.l.b16 %v840
    %v1031 = vunpack.c.h.b16 %v840
    %v1032 = vunpack.c.l.b16 %v841
    %v1033 = vunpack.c.h.b16 %v841
    %v1034 = vunpack.c.l.b16 %v842
    %v1035 = vunpack.c.l.b16 %v843
    %v1036 = vunpack.c.h.b16 %v843
    %v1037 = vunpack.c.l.b16 %v844
    %v1038 = vunpack.c.h.b16 %v844
    %v1039 = vunpack.c.l.b16 %v845
    %v1040 = vunpack.c.h.b16 %v845
    %v1041 = vunpack.c.l.b16 %v846
    %v1042 = vunpack.c.h.b16 %v846
    %v1043 = vunpack.c.l.b16 %v847
    %v1044 = vunpack.c.l.b16 %v848
    %v1045 = vunpack.c.h.b16 %v848
    %v1046 = vunpack.c.l.b16 %v849
    %v1047 = vunpack.c.h.b16 %v849
    %v1048 = vunpack.c.l.b16 %v850
    %v1049 = vunpack.c.h.b16 %v850
    %v1050 = vunpack.c.l.b16 %v851
    %v1051 = vunpack.c.h.b16 %v851
    %v1052 = vunpack.c.l.b16 %v852
    %v1053 = vunpack.c.l.b16 %v853
    %v1054 = vunpack.c.h.b16 %v853
    %v1055 = vunpack.c.l.b16 %v854
    %v1056 = vunpack.c.h.b16 %v854
    %v1057 = vunpack.c.l.b16 %v855
    %v1058 = vunpack.c.h.b16 %v855
    %v1059 = vunpack.c.l.b16 %v856
    %v1060 = vunpack.c.h.b16 %v856
    %v1061 = vunpack.c.l.b16 %v857
    %v1062 = vunpack.c.l.b16 %v858
    %v1063 = vunpack.c.h.b16 %v858
    %v1064 = vunpack.c.l.b16 %v859
    %v1065 = vunpack.c.h.b16 %v859
    %v1066 = vunpack.c.l.b16 %v860
    %v1067 = vunpack.c.h.b16 %v860
    %v1068 = vunpack.c.l.b16 %v861
    %v1069 = vunpack.c.h.b16 %v861
    %v1070 = vunpack.c.l.b16 %v862
    %v1071 = vunpack.c.l.b16 %v863
    %v1072 = vunpack.c.h.b16 %v863
    %v1073 = vunpack.c.l.b16 %v864
    %v1074 = vunpack.c.h.b16 %v864
    %v1075 = vunpack.c.l.b16 %v865
    %v1076 = vunpack.c.h.b16 %v865
    %v1077 = vunpack.c.l.b16 %v866
    %v1078 = vunpack.c.h.b16 %v866
    %v1079 = vunpack.c.l.b16 %v867
    %v1080 = vunpack.c.l.b16 %v868
    %v1081 = vunpack.c.h.b16 %v868
    %v1082 = vunpack.c.l.b16 %v869
    %v1083 = vunpack.c.h.b16 %v869
    %v1084 = vunpack.c.l.b16 %v870
    %v1085 = vunpack.c.h.b16 %v870
    %v1086 = vunpack.c.l.b16 %v871
    %v1087 = vunpack.c.h.b16 %v871
    %v1088 = vunpack.c.l.b16 %v872
    %v1089 = vunpack.c.l.b16 %v873
    %v1090 = vunpack.c.h.b16 %v873
    %v1091 = vunpack.c.l.b16 %v874
    %v1092 = vunpack.c.h.b16 %v874
    %v1093 = vunpack.c.l.b16 %v875
    %v1094 = vunpack.c.h.b16 %v875
    %v1095 = vunpack.c.l.b16 %v876
    %v1096 = vunpack.c.h.b16 %v876
    %v1097 = vunpack.c.l.b16 %v877
    %v1098 = vunpack.c.l.b16 %v878
    %v1099 = vunpack.c.h.b16 %v878
    %v1100 = vunpack.c.l.b16 %v879
    %v1101 = vunpack.c.h.b16 %v879
    %v1102 = vunpack.c.l.b16 %v880
    %v1103 = vunpack.c.h.b16 %v880
    %v1104 = vunpack.c.l.b16 %v881
    %v1105 = vunpack.c.h.b16 %v881
    %v1106 = vunpack.c.l.b16 %v882
    %v1107 = vpack.c.b16 %v972, %v963
    %v1108 = vpack.c.b16 %v973, %v964
    %v1109 = vpack.c.b16 %v974, %v965
    %v1110 = vpack.c.b16 %v975, %v966
    %v1111 = vpack.c.b16 %v976, %v967
    %v1112 = vpack.c.b16 %v977, %v968
    %v1113 = vpack.c.b16 %v978, %v969
    %v1114 = vpack.c.b16 %v979, %v970
    %v1115 = vpack.c.b16 %v980, %v971
    %v1116 = vpack.c.b16 %v990, %v981
    %v1117 = vpack.c.b16 %v991, %v982
    %v1118 = vpack.c.b16 %v992, %v983
    %v1119 = vpack.c.b16 %v993, %v984
    %v1120 = vpack.c.b16 %v994, %v985
    %v1121 = vpack.c.b16 %v995, %v986
    %v1122 = vpack.c.b16 %v996, %v987
    %v1123 = vpack.c.b16 %v997, %v988
    %v1124 = vpack.c.b16 %v998, %v989
    %v1125 = vpack.c.b16 %v1008, %v999
    %v1126 = vpack.c.b16 %v1009, %v1000
    %v1127 = vpack.c.b16 %v1010, %v1001
    %v1128 = vpack.c.b16 %v1011, %v1002
    %v1129 = vpack.c.b16 %v1012, %v1003
    %v1130 = vpack.c.b16 %v1013, %v1004
    %v1131 = vpack.c.b16 %v1014, %v1005
    %v1132 = vpack.c.b16 %v1015, %v1006
    %v1133 = vpack.c.b16 %v1016, %v1007
    %v1134 = vpack.c.b16 %v1026, %v1017
    %v1135 = vpack.c.b16 %v1027, %v1018
    %v1136 = vpack.c.b16 %v1028, %v1019
    %v1137 = vpack.c.b16 %v1029, %v1020
    %v1138 = vpack.c.b16 %v1030, %v1021
    %v1139 = vpack.c.b16 %v1031, %v1022
    %v1140 = vpack.c.b16 %v1032, %v1023
    %v1141 = vpack.c.b16 %v1033, %v1024
    %v1142 = vpack.c.b16 %v1034, %v1025
    %v1143 = vpack.c.b16 %v1044, %v1035
    %v1144 = vpack.c.b16 %v1045, %v1036
    %v1145 = vpack.c.b16 %v1046, %v1037
    %v1146 = vpack.c.b16 %v1047, %v1038
    %v1147 = vpack.c.b16 %v1048, %v1039
    %v1148 = vpack.c.b16 %v1049, %v1040
    %v1149 = vpack.c.b16 %v1050, %v1041
    %v1150 = vpack.c.b16 %v1051, %v1042
    %v1151 = vpack.c.b16 %v1052, %v1043
    %v1152 = vpack.c.b16 %v1062, %v1053
    %v1153 = vpack.c.b16 %v1063, %v1054
    %v1154 = vpack.c.b16 %v1064, %v1055
    %v1155 = vpack.c.b16 %v1065, %v1056
    %v1156 = vpack.c.b16 %v1066, %v1057
    %v1157 = vpack.c.b16 %v1067, %v1058
    %v1158 = vpack.c.b16 %v1068, %v1059
    %v1159 = vpack.c.b16 %v1069, %v1060
    %v1160 = vpack.c.b16 %v1070, %v1061
    %v1161 = vpack.c.b16 %v1080, %v1071
    %v1162 = vpack.c.b16 %v1081, %v1072
    %v1163 = vpack.c.b16 %v1082, %v1073
    %v1164 = vpack.c.b16 %v1083, %v1074
    %v1165 = vpack.c.b16 %v1084, %v1075
    %v1166 = vpack.c.b16 %v1085, %v1076
    %v1167 = vpack.c.b16 %v1086, %v1077
    %v1168 = vpack.c.b16 %v1087, %v1078
    %v1169 = vpack.c.b16 %v1088, %v1079
    %v1170 = vpack.c.b16 %v1098, %v1089
    %v1171 = vpack.c.b16 %v1099, %v1090
    %v1172 = vpack.c.b16 %v1100, %v1091
    %v1173 = vpack.c.b16 %v1101, %v1092
    %v1174 = vpack.c.b16 %v1102, %v1093
    %v1175 = vpack.c.b16 %v1103, %v1094
    %v1176 = vpack.c.b16 %v1104, %v1095
    %v1177 = vpack.c.b16 %v1105, %v1096
    %v1178 = vpack.c.b16 %v1106, %v1097
    %1251 = vmatprep.subr.bf16.mxu0 %v1108
    %1252 = vmatpush1.bf16.msra.mxu0 %v1107
    %1253 = vmatprep.subr.bf16.mxu0 %v1117
    %1254 = vmatpush1.bf16.msra.mxu0 %v1116
    %1255 = vmatprep.subr.bf16.mxu0 %v1126
    %1256 = vmatpush1.bf16.msra.mxu0 %v1125
    %1257 = vmatprep.subr.bf16.mxu0 %v1135
    %1258 = vmatpush1.bf16.msra.mxu0 %v1134
    %1259 = vmatprep.subr.bf16.mxu0 %v1144
    %1260 = vmatpush1.bf16.msra.mxu0 %v1143
    %1261 = vmatprep.subr.bf16.mxu0 %v1153
    %1262 = vmatpush1.bf16.msra.mxu0 %v1152
    %1263 = vmatprep.subr.bf16.mxu0 %v1162
    %1264 = vmatpush1.bf16.msra.mxu0 %v1161
    %1265 = vmatprep.subr.bf16.mxu0 %v1171
    %1266 = vmatpush1.bf16.msra.mxu0 %v1170
    %1267 = vmatprep.subr.bf16.mxu0 0
    %1268 = vmatpush1.bf16.msra.mxu0 0
    %1269 = vmatprep.subr.bf16.mxu0 0
    %1270 = vmatpush1.bf16.msra.mxu0 0
    %1271 = vmatprep.subr.bf16.mxu0 0
    %1272 = vmatpush1.bf16.msra.mxu0 0
    %1273 = vmatprep.subr.bf16.mxu0 0
    %1274 = vmatpush1.bf16.msra.mxu0 0
    %1275 = vmatprep.subr.bf16.mxu0 0
    %1276 = vmatpush1.bf16.msra.mxu0 0
    %1277 = vmatprep.subr.bf16.mxu0 0
    %1278 = vmatpush1.bf16.msra.mxu0 0
    %1279 = vmatprep.subr.bf16.mxu0 0
    %1280 = vmatpush1.bf16.msra.mxu0 0
    %1281 = vmatprep.subr.bf16.mxu0 0
    %1282 = vmatpush1.bf16.msra.mxu0 0
    %1283 = vmatprep.mubr.bf16.mxu0 0
    %1284 = vmatmul.mubr.bf16.gmra.mrb[0].mxu0 %v802
    %v1285 = vpop.f32.mrb[0].mxu0
    %v1286 = vadd.f32 0.0, %v1285
    %v1287 = vpop.f32.mrb[0].mxu0
    %v1288 = vadd.f32 0.0, %v1287
    %v1289 = vpop.f32.mrb[0].mxu0
    %v1290 = vpop.f32.mrb[0].mxu0
    %1291 = vdwg.mxu0
    %1292 = vmatprep.subr.bf16.mxu0 %v1110
    %1293 = vmatpush1.bf16.msra.mxu0 %v1109
    %1294 = vmatprep.subr.bf16.mxu0 %v1119
    %1295 = vmatpush1.bf16.msra.mxu0 %v1118
    %1296 = vmatprep.subr.bf16.mxu0 %v1128
    %1297 = vmatpush1.bf16.msra.mxu0 %v1127
    %1298 = vmatprep.subr.bf16.mxu0 %v1137
    %1299 = vmatpush1.bf16.msra.mxu0 %v1136
    %1300 = vmatprep.subr.bf16.mxu0 %v1146
    %1301 = vmatpush1.bf16.msra.mxu0 %v1145
    %1302 = vmatprep.subr.bf16.mxu0 %v1155
    %1303 = vmatpush1.bf16.msra.mxu0 %v1154
    %1304 = vmatprep.subr.bf16.mxu0 %v1164
    %1305 = vmatpush1.bf16.msra.mxu0 %v1163
    %1306 = vmatprep.subr.bf16.mxu0 %v1173
    %1307 = vmatpush1.bf16.msra.mxu0 %v1172
    %1308 = vmatprep.subr.bf16.mxu0 0
    %1309 = vmatpush1.bf16.msra.mxu0 0
    %1310 = vmatprep.subr.bf16.mxu0 0
    %1311 = vmatpush1.bf16.msra.mxu0 0
    %1312 = vmatprep.subr.bf16.mxu0 0
    %1313 = vmatpush1.bf16.msra.mxu0 0
    %1314 = vmatprep.subr.bf16.mxu0 0
    %1315 = vmatpush1.bf16.msra.mxu0 0
    %1316 = vmatprep.subr.bf16.mxu0 0
    %1317 = vmatpush1.bf16.msra.mxu0 0
    %1318 = vmatprep.subr.bf16.mxu0 0
    %1319 = vmatpush1.bf16.msra.mxu0 0
    %1320 = vmatprep.subr.bf16.mxu0 0
    %1321 = vmatpush1.bf16.msra.mxu0 0
    %1322 = vmatprep.subr.bf16.mxu0 0
    %1323 = vmatpush1.bf16.msra.mxu0 0
    %1324 = vmatprep.mubr.bf16.mxu0 0
    %1325 = vmatmul.mubr.bf16.gmra.mrb[0].mxu0 %v802
    %v1326 = vpop.f32.mrb[0].mxu0
    %v1327 = vadd.f32 0.0, %v1326
    %v1328 = vpop.f32.mrb[0].mxu0
    %v1329 = vadd.f32 0.0, %v1328
    %v1330 = vpop.f32.mrb[0].mxu0
    %v1331 = vpop.f32.mrb[0].mxu0
    %1332 = vdwg.mxu0
    %1333 = vmatprep.subr.bf16.mxu0 %v1112
    %1334 = vmatpush1.bf16.msra.mxu0 %v1111
    %1335 = vmatprep.subr.bf16.mxu0 %v1121
    %1336 = vmatpush1.bf16.msra.mxu0 %v1120
    %1337 = vmatprep.subr.bf16.mxu0 %v1130
    %1338 = vmatpush1.bf16.msra.mxu0 %v1129
    %1339 = vmatprep.subr.bf16.mxu0 %v1139
    %1340 = vmatpush1.bf16.msra.mxu0 %v1138
    %1341 = vmatprep.subr.bf16.mxu0 %v1148
    %1342 = vmatpush1.bf16.msra.mxu0 %v1147
    %1343 = vmatprep.subr.bf16.mxu0 %v1157
    %1344 = vmatpush1.bf16.msra.mxu0 %v1156
    %1345 = vmatprep.subr.bf16.mxu0 %v1166
    %1346 = vmatpush1.bf16.msra.mxu0 %v1165
    %1347 = vmatprep.subr.bf16.mxu0 %v1175
    %1348 = vmatpush1.bf16.msra.mxu0 %v1174
    %1349 = vmatprep.subr.bf16.mxu0 0
    %1350 = vmatpush1.bf16.msra.mxu0 0
    %1351 = vmatprep.subr.bf16.mxu0 0
    %1352 = vmatpush1.bf16.msra.mxu0 0
    %1353 = vmatprep.subr.bf16.mxu0 0
    %1354 = vmatpush1.bf16.msra.mxu0 0
    %1355 = vmatprep.subr.bf16.mxu0 0
    %1356 = vmatpush1.bf16.msra.mxu0 0
    %1357 = vmatprep.subr.bf16.mxu0 0
    %1358 = vmatpush1.bf16.msra.mxu0 0
    %1359 = vmatprep.subr.bf16.mxu0 0
    %1360 = vmatpush1.bf16.msra.mxu0 0
    %1361 = vmatprep.subr.bf16.mxu0 0
    %1362 = vmatpush1.bf16.msra.mxu0 0
    %1363 = vmatprep.subr.bf16.mxu0 0
    %1364 = vmatpush1.bf16.msra.mxu0 0
    %1365 = vmatprep.mubr.bf16.mxu0 0
    %1366 = vmatmul.mubr.bf16.gmra.mrb[0].mxu0 %v802
    %v1367 = vpop.f32.mrb[0].mxu0
    %v1368 = vadd.f32 0.0, %v1367
    %v1369 = vpop.f32.mrb[0].mxu0
    %v1370 = vadd.f32 0.0, %v1369
    %v1371 = vpop.f32.mrb[0].mxu0
    %v1372 = vpop.f32.mrb[0].mxu0
    %1373 = vdwg.mxu0
    %1374 = vmatprep.subr.bf16.mxu0 %v1114
    %1375 = vmatpush1.bf16.msra.mxu0 %v1113
    %1376 = vmatprep.subr.bf16.mxu0 %v1123
    %1377 = vmatpush1.bf16.msra.mxu0 %v1122
    %1378 = vmatprep.subr.bf16.mxu0 %v1132
    %1379 = vmatpush1.bf16.msra.mxu0 %v1131
    %1380 = vmatprep.subr.bf16.mxu0 %v1141
    %1381 = vmatpush1.bf16.msra.mxu0 %v1140
    %1382 = vmatprep.subr.bf16.mxu0 %v1150
    %1383 = vmatpush1.bf16.msra.mxu0 %v1149
    %1384 = vmatprep.subr.bf16.mxu0 %v1159
    %1385 = vmatpush1.bf16.msra.mxu0 %v1158
    %1386 = vmatprep.subr.bf16.mxu0 %v1168
    %1387 = vmatpush1.bf16.msra.mxu0 %v1167
    %1388 = vmatprep.subr.bf16.mxu0 %v1177
    %1389 = vmatpush1.bf16.msra.mxu0 %v1176
    %1390 = vmatprep.subr.bf16.mxu0 0
    %1391 = vmatpush1.bf16.msra.mxu0 0
    %1392 = vmatprep.subr.bf16.mxu0 0
    %1393 = vmatpush1.bf16.msra.mxu0 0
    %1394 = vmatprep.subr.bf16.mxu0 0
    %1395 = vmatpush1.bf16.msra.mxu0 0
    %1396 = vmatprep.subr.bf16.mxu0 0
    %1397 = vmatpush1.bf16.msra.mxu0 0
    %1398 = vmatprep.subr.bf16.mxu0 0
    %1399 = vmatpush1.bf16.msra.mxu0 0
    %1400 = vmatprep.subr.bf16.mxu0 0
    %1401 = vmatpush1.bf16.msra.mxu0 0
    %1402 = vmatprep.subr.bf16.mxu0 0
    %1403 = vmatpush1.bf16.msra.mxu0 0
    %1404 = vmatprep.subr.bf16.mxu0 0
    %1405 = vmatpush1.bf16.msra.mxu0 0
    %1406 = vmatprep.mubr.bf16.mxu0 0
    %1407 = vmatmul.mubr.bf16.gmra.mrb[0].mxu0 %v802
    %v1408 = vpop.f32.mrb[0].mxu0
    %v1409 = vadd.f32 0.0, %v1408
    %v1410 = vpop.f32.mrb[0].mxu0
    %v1411 = vadd.f32 0.0, %v1410
    %v1412 = vpop.f32.mrb[0].mxu0
    %v1413 = vpop.f32.mrb[0].mxu0
    %1414 = vdwg.mxu0
    %1415 = vmatprep.subr.bf16.mxu0 0
    %1416 = vmatpush1.bf16.msra.mxu0 %v1115
    %1417 = vmatprep.subr.bf16.mxu0 0
    %1418 = vmatpush1.bf16.msra.mxu0 %v1124
    %1419 = vmatprep.subr.bf16.mxu0 0
    %1420 = vmatpush1.bf16.msra.mxu0 %v1133
    %1421 = vmatprep.subr.bf16.mxu0 0
    %1422 = vmatpush1.bf16.msra.mxu0 %v1142
    %1423 = vmatprep.subr.bf16.mxu0 0
    %1424 = vmatpush1.bf16.msra.mxu0 %v1151
    %1425 = vmatprep.subr.bf16.mxu0 0
    %1426 = vmatpush1.bf16.msra.mxu0 %v1160
    %1427 = vmatprep.subr.bf16.mxu0 0
    %1428 = vmatpush1.bf16.msra.mxu0 %v1169
    %1429 = vmatprep.subr.bf16.mxu0 0
    %1430 = vmatpush1.bf16.msra.mxu0 %v1178
    %1431 = vmatprep.subr.bf16.mxu0 0
    %1432 = vmatpush1.bf16.msra.mxu0 0
    %1433 = vmatprep.subr.bf16.mxu0 0
    %1434 = vmatpush1.bf16.msra.mxu0 0
    %1435 = vmatprep.subr.bf16.mxu0 0
    %1436 = vmatpush1.bf16.msra.mxu0 0
    %1437 = vmatprep.subr.bf16.mxu0 0
    %1438 = vmatpush1.bf16.msra.mxu0 0
    %1439 = vmatprep.subr.bf16.mxu0 0
    %1440 = vmatpush1.bf16.msra.mxu0 0
    %1441 = vmatprep.subr.bf16.mxu0 0
    %1442 = vmatpush1.bf16.msra.mxu0 0
    %1443 = vmatprep.subr.bf16.mxu0 0
    %1444 = vmatpush1.bf16.msra.mxu0 0
    %1445 = vmatprep.subr.bf16.mxu0 0
    %1446 = vmatpush1.bf16.msra.mxu0 0
    %1447 = vmatprep.mubr.bf16.mxu0 0
    %1448 = vmatmul.mubr.bf16.gmra.mrb[0].mxu0 %v802
    %v1449 = vpop.f32.mrb[0].mxu0
    %v1450 = vadd.f32 0.0, %v1449
    %v1451 = vpop.f32.mrb[0].mxu0
    %v1452 = vpop.f32.mrb[0].mxu0
    %v1453 = vpop.f32.mrb[0].mxu0
    %1454 = vdwg.mxu0
    %v1455 = vld [vmem:[%s4] sm:$0xff]
    %v1457 = vlaneseq
    %v1458 = vshrl.u32 %v1457, 7
    %v1459 = vsub.s32 0, %v1458
    %v1460 = vrot.slane %v1455, %v1459
    %v1461 = vlaneseq
    %v1462 = vshrl.u32 %v1461, 7
    %v1463 = vsub.s32 1, %v1462
    %v1464 = vrot.slane %v1455, %v1463
    %v1465 = vlaneseq
    %v1466 = vshrl.u32 %v1465, 7
    %v1467 = vsub.s32 2, %v1466
    %v1468 = vrot.slane %v1455, %v1467
    %v1469 = vlaneseq
    %v1470 = vshrl.u32 %v1469, 7
    %v1471 = vsub.s32 3, %v1470
    %v1472 = vrot.slane %v1455, %v1471
    %v1473 = vlaneseq
    %v1474 = vshrl.u32 %v1473, 7
    %v1475 = vsub.s32 4, %v1474
    %v1476 = vrot.slane %v1455, %v1475
    %v1477 = vlaneseq
    %v1478 = vshrl.u32 %v1477, 7
    %v1479 = vsub.s32 5, %v1478
    %v1480 = vrot.slane %v1455, %v1479
    %v1481 = vlaneseq
    %v1482 = vshrl.u32 %v1481, 7
    %v1483 = vsub.s32 6, %v1482
    %v1484 = vrot.slane %v1455, %v1483
    %v1485 = vlaneseq
    %v1486 = vshrl.u32 %v1485, 7
    %v1487 = vsub.s32 7, %v1486
    %v1488 = vrot.slane %v1455, %v1487
    %v1497 = vadd.f32 %v1286, %v1460
    %v1498 = vadd.f32 %v1288, %v1464
    %v1499 = vadd.f32 %v1327, %v1468
    %v1500 = vadd.f32 %v1329, %v1472
    %v1501 = vadd.f32 %v1368, %v1476
    %v1502 = vadd.f32 %v1370, %v1480
    %v1503 = vadd.f32 %v1409, %v1484
    %v1504 = vadd.f32 %v1411, %v1488
    %v1513 = vcombine.low %v1497, %v1498
    %v1514 = vcombine.low %v1499, %v1500
    %v1516 = vunpack.c.l.s4 1983009808
    %v1517 = vunpack.c.0.s8 %v1516
    %v1518 = vlaneseq
    %v1519 = vshrl.u32 %v1518, 7
    %v1520 = vsub.s32 %v1517, %v1519
    %v1521 = vrot.slane %v1513, %v1520
    %v1523 = vunpack.c.l.s4 1983009808
    %v1524 = vunpack.c.0.s8 %v1523
    %v1525 = vlaneseq
    %v1526 = vshrl.u32 %v1525, 7
    %v1527 = vsub.s32 %v1524, %v1526
    %v1528 = vrot.slane %v1514, %v1527
    %v1529 = vcombine.low %v1521, %v1528
    %v1530 = vcombine.low %v1501, %v1502
    %v1531 = vcombine.low %v1503, %v1504
    %v1533 = vunpack.c.l.s4 1983009808
    %v1534 = vunpack.c.0.s8 %v1533
    %v1535 = vlaneseq
    %v1536 = vshrl.u32 %v1535, 7
    %v1537 = vsub.s32 %v1534, %v1536
    %v1538 = vrot.slane %v1530, %v1537
    %v1540 = vunpack.c.l.s4 1983009808
    %v1541 = vunpack.c.0.s8 %v1540
    %v1542 = vlaneseq
    %v1543 = vshrl.u32 %v1542, 7
    %v1544 = vsub.s32 %v1541, %v1543
    %v1545 = vrot.slane %v1531, %v1544
    %v1546 = vcombine.low %v1538, %v1545
    %1549 = vst [vmem:[#allocation11] sm:$0xff] %v1529
    %1550 = vst [vmem:[#allocation11 + $0x8] sm:$0xff] %v1546
    %v1551 = vmul.f32 %v796, %v796
    %vm1552 = vcmask 1041408
    %v1553 = vsel %vm1552, %v1551, 0.0
    %1554 = vadd.xlane.f32.xlu0 %v1553
    %v1555 = vpop.xlane.xlu0 %1554
    %v1556 = vld [vmem:[%s5] sm:$0x1]
    %v1558 = vlaneseq
    %v1559 = vshrl.u32 %v1558, 7
    %v1560 = vsub.s32 0, %v1559
    %v1561 = vrot.slane %v1556, %v1560
    %v1563 = vadd.f32 %v1555, %v1561
    %v1564 = vadd.f32 %v1563, %v1450
    %v1565 = vmax.f32 %v1564, 0.0
    %v1566 = vadd.f32 %v1565, 1.0
    %v1567 = vrcp.pop %v1566
    %v1568 = vmul.f32 1.0, %v1567
    %v1569 = vsel %vm1552, %v1568, 0.0
    %1570 = vadd.xlane.f32.xlu0 %v1569
    %v1571 = vpop.xlane.xlu0 %1570
    %v1572 = vrcp.pop %v1571
    %v1573 = vmul.f32 %v1568, %v1572
    %1574 = vst [vmem:[#allocation8] sm:$0x3] %v1573
    // Predicated region
    $region38: #{tpu_custom_call.1} parent=1 // pred_check
      _
    $region39: #{tpu_custom_call.1} parent=1 // pred_check_branch
      %1576 = sbr.rel (0) target = $region41
    $region40: #{tpu_custom_call.1} parent=1 // pred_region
      %s1578 = ssub.s32 32, 32
      %1579 = vsyncadd [#allocation4], %s1578
      %s1581 = sshll.u32 [#allocation8], 4
      %s1582 = int_to_ptr.vmem [resolvable:$true] %s1581
      %1584 = dma.vmem_to_hbm [thread:$0]  %s1582, 32, %s6, [#allocation4]
    $region41: #{tpu_custom_call.1} parent=1 // pred_fallthru
      _
    // Predicated region
    $region42: #{tpu_custom_call.1} parent=1 // pred_check
      _
    $region43: #{tpu_custom_call.1} parent=1 // pred_check_branch
      %1586 = sbr.rel (0) target = $region45
    $region44: #{tpu_custom_call.1} parent=1 // pred_region
      %s1588 = ssub.s32 32, 32
      %1589 = vsyncadd [#allocation10], %s1588
      %s1591 = sshll.u32 [#allocation9], 4
      %s1592 = int_to_ptr.vmem [resolvable:$true] %s1591
      %1594 = dma.vmem_to_hbm [thread:$0]  %s1592, 32, %s7, [#allocation10]
    $region45: #{tpu_custom_call.1} parent=1 // pred_fallthru
      _
    // Predicated region
    $region46: #{tpu_custom_call.1} parent=1 // pred_check
      _
    $region47: #{tpu_custom_call.1} parent=1 // pred_check_branch
      %1596 = sbr.rel (0) target = $region49
    $region48: #{tpu_custom_call.1} parent=1 // pred_region
      %s1598 = ssub.s32 256, 256
      %1599 = vsyncadd [#allocation10], %s1598
      %s1601 = sshll.u32 [#allocation11], 4
      %s1602 = int_to_ptr.vmem [resolvable:$true] %s1601
      %1604 = dma.vmem_to_hbm [thread:$0]  %s1602, 256, %s8, [#allocation10]
    $region49: #{tpu_custom_call.1} parent=1 // pred_fallthru
      _
    // Predicated region
    $region50: #{tpu_custom_call.1} parent=1 // pred_check
      _
    $region51: #{tpu_custom_call.1} parent=1 // pred_check_branch
      %1606 = sbr.rel (0) target = $region53
    $region52: #{tpu_custom_call.1} parent=1 // pred_region
      %1607 = dma.done [#allocation4], 32
    $region53: #{tpu_custom_call.1} parent=1 // pred_fallthru
      _
    // Predicated region
    $region54: #{tpu_custom_call.1} parent=1 // pred_check
      _
    $region55: #{tpu_custom_call.1} parent=1 // pred_check_branch
      %1609 = sbr.rel (0) target = $region57
    $region56: #{tpu_custom_call.1} parent=1 // pred_region
      %1610 = dma.done [#allocation10], 32
    $region57: #{tpu_custom_call.1} parent=1 // pred_fallthru
      _
    // Predicated region
    $region58: #{tpu_custom_call.1} parent=1 // pred_check
      _
    $region59: #{tpu_custom_call.1} parent=1 // pred_check_branch
      %1612 = sbr.rel (0) target = $region61
    $region60: #{tpu_custom_call.1} parent=1 // pred_region
      %1613 = dma.done [#allocation10], 256
    $region61: #{tpu_custom_call.1} parent=1 // pred_fallthru
      _
    %1614 = vsyncpa [#allocation3], 1
    %1615 = vsyncpa [#allocation6], 1
    %1616 = vsyncpa [#allocation4], 1
    %1617 = vsyncpa [#allocation10], 1

</llo_original>
